<compile_context>
chip_gen: v7x
topology: tpu7x:2x2x1
jax: 0.10.0
libtpu: 0.0.40
codegen_flags: <defaults>
</compile_context>

<pallas_src>
import functools

import jax
import jax.numpy as jnp
import numpy as np
from jax.experimental import pallas as pl
from jax.experimental.pallas import tpu as pltpu


# ----------------------------- Pallas kernel ------------------------------- #
def _make_conv_kernel(O, Cpad, KH, KW, Wp, Lpad):
    """Builds the per-image conv kernel (all sizes are static Python ints)."""

    def kernel(x_ref, w_ref, b_ref, o_ref):
        # x_ref: (1, Cpad, Lpad)  flattened zero-padded image (row-major Hp*Wp,
        #                         zero tail in both the channel and lane dims)
        # w_ref: (KH*KW, O, Cpad) weight taps, w_ref[i*KW+j] == W[:, :, i, j]
        # b_ref: (O, 1)           bias
        # o_ref: (1, O, Lpad)     lane-dense output slab
        x = x_ref[0]                                   # (Cpad, Lpad)
        acc = jnp.zeros((O, Lpad), jnp.float32)
        for i in range(KH):
            for j in range(KW):
                s = i * Wp + j                         # flattened tap offset
                # rolled[t] = x[t + s]  (np.roll by -s, expressed positively)
                xs = x if s == 0 else pltpu.roll(x, shift=Lpad - s, axis=1)
                acc = acc + jnp.dot(w_ref[i * KW + j], xs,
                                    preferred_element_type=jnp.float32)
        o_ref[0] = acc + b_ref[...]                    # (O,1) broadcasts over lanes

    return kernel


# ------------------------------ wrapper ------------------------------------ #
@functools.partial(jax.jit, static_argnames=("padding",))
def fft_conv1d_forward(x, weight, bias, padding):
    """Replicates FFTConv1d.forward: NCHW in, NCHW out (float32)."""
    N, C, H, W = x.shape
    O, _, KH, KW = weight.shape
    p = padding

    Hp, Wp = H + 2 * p, W + 2 * p
    OH, OW = Hp - KH + 1, Wp - KW + 1
    L = Hp * Wp
    Lpad = ((L + 127) // 128) * 128          # lane-dense flattened-image width
    Cpad = ((C + 7) // 8) * 8                # contraction dim -> multiple of 8

    # nn.ZeroPad2d(p), then flatten spatial dims per channel (as the FFT path
    # does), zero-fill to (Cpad, Lpad).  XLA fuses this into one ~tens-of-KB
    # buffer feeding the kernel; no im2col patches array is materialized.
    x_pad = jnp.pad(x.astype(jnp.float32), ((0, 0), (0, 0), (p, p), (p, p)))
    x_flat = x_pad.reshape(N, C, L)
    x_flat = jnp.pad(x_flat, ((0, 0), (0, Cpad - C), (0, Lpad - L)))

    # Weight taps: w_taps[i*KW + j] = weight[:, :, i, j], channel dim padded.
    w_taps = weight.astype(jnp.float32).transpose(2, 3, 0, 1).reshape(KH * KW, O, C)
    w_taps = jnp.pad(w_taps, ((0, 0), (0, 0), (0, Cpad - C)))
    b2 = bias.astype(jnp.float32).reshape(O, 1)

    kernel = _make_conv_kernel(O, Cpad, KH, KW, Wp, Lpad)

    cost = pl.CostEstimate(
        flops=2 * N * KH * KW * O * Cpad * Lpad,
        transcendentals=0,
        bytes_accessed=4 * (N * Cpad * Lpad + KH * KW * O * Cpad + O + N * O * Lpad),
    )

    out = pl.pallas_call(
        kernel,
        out_shape=jax.ShapeDtypeStruct((N, O, Lpad), jnp.float32),
        grid_spec=pltpu.PrefetchScalarGridSpec(
            num_scalar_prefetch=0,
            grid=(N,),                                          # one step per image
            in_specs=[
                pl.BlockSpec((1, Cpad, Lpad), lambda n: (n, 0, 0)),      # image n
                pl.BlockSpec((KH * KW, O, Cpad), lambda n: (0, 0, 0)),   # taps (resident)
                pl.BlockSpec((O, 1), lambda n: (0, 0)),                  # bias (resident)
            ],
            out_specs=pl.BlockSpec((1, O, Lpad), lambda n: (n, 0, 0)),
        ),
        compiler_params=pltpu.CompilerParams(
            dimension_semantics=("parallel",),
        ),
        cost_estimate=cost,
    )(x_flat, w_taps, b2)

    # Valid output positions are m = oh*Wp + ow (oh < OH, ow < OW); cropping
    # the flattened result yields NCHW directly (no transpose).
    y = out[:, :, :OH * Wp].reshape(N, O, OH, Wp)[:, :, :, :OW]
    return y


# -------------------------------- driver ----------------------------------- #
if __name__ == "__main__":
    # Shapes consistent with a Conv2d(in=4, out=8, kernel=3, padding=1).
    key = jax.random.PRNGKey(0)
    kx, kw, kb = jax.random.split(key, 3)

    N, C, H, W = 2, 4, 16, 16
    O, KH, KW = 8, 3, 3
    padding = 1

    x = jax.random.normal(kx, (N, C, H, W), dtype=jnp.float32)
    weight = jax.random.normal(kw, (O, C, KH, KW), dtype=jnp.float32) * 0.1
    bias = jax.random.normal(kb, (O,), dtype=jnp.float32) * 0.1

    out = fft_conv1d_forward(x, weight, bias, padding)
    out = jax.block_until_ready(out)

    # Reference: the same math the module's FFT path reduces to.
    ref = jax.lax.conv_general_dilated(
        jnp.pad(x, ((0, 0), (0, 0), (padding, padding), (padding, padding))),
        weight,
        window_strides=(1, 1),
        padding="VALID",
        dimension_numbers=("NCHW", "OIHW", "NCHW"),
        precision=jax.lax.Precision.HIGHEST,
    ) + bias.reshape(1, O, 1, 1)

    assert out.shape == (N, O, H, W), out.shape
    assert out.dtype == jnp.float32
    np.testing.assert_allclose(np.asarray(out), np.asarray(ref), rtol=1e-5, atol=1e-5)

    print("KERNEL_OK")
</pallas_src>

<mosaic_0001>
module attributes {stable_mosaic.version = 11 : i64} {
  func.func @kernel(%arg0: i32, %arg1: memref<1x8x384xf32, #tpu.memory_space<vmem>>, %arg2: memref<9x8x8xf32, #tpu.memory_space<vmem>>, %arg3: memref<8x1xf32, #tpu.memory_space<vmem>>, %arg4: memref<1x8x384xf32, #tpu.memory_space<vmem>>) attributes {dimension_semantics = [#tpu.dimension_semantics<parallel>], iteration_bounds = array<i64: 2>, scalar_prefetch = 0 : i64, scratch_operands = 0 : i64, tpu.core_type = #tpu.core_type<tc>, window_params = [{transform_indices = @transform_0, window_bounds = array<i64: 1, 8, 384>}, {pipeline_mode = #tpu.pipeline_mode<synchronous>, transform_indices = @transform_1, window_bounds = array<i64: 9, 8, 8>}, {pipeline_mode = #tpu.pipeline_mode<synchronous>, transform_indices = @transform_2, window_bounds = array<i64: 8, 1>}, {transform_indices = @transform_3, window_bounds = array<i64: 1, 8, 384>}]} {
    %c0 = arith.constant 0 : index
    %c0_0 = arith.constant 0 : index
    %c0_1 = arith.constant 0 : index
    %0 = vector.load %arg1[%c0, %c0_0, %c0_1] : memref<1x8x384xf32, #tpu.memory_space<vmem>>, vector<1x8x384xf32>
    %1 = vector.shape_cast %0 : vector<1x8x384xf32> to vector<8x384xf32>
    %cst = arith.constant 0.000000e+00 : f32
    %2 = vector.broadcast %cst : f32 to vector<8x384xf32>
    %c0_2 = arith.constant 0 : index
    %c0_3 = arith.constant 0 : index
    %c0_4 = arith.constant 0 : index
    %3 = vector.load %arg2[%c0_2, %c0_3, %c0_4] : memref<9x8x8xf32, #tpu.memory_space<vmem>>, vector<1x8x8xf32>
    %4 = vector.shape_cast %3 : vector<1x8x8xf32> to vector<8x8xf32>
    %cst_5 = arith.constant dense<0.000000e+00> : vector<8x384xf32>
    %5 = tpu.matmul %4, %1, %cst_5 {dimension_numbers = #tpu.dot_dimension_numbers<[1], [0], [0], [1], [0, 0, 1, 1], [], []>} : vector<8x8xf32>, vector<8x384xf32>, vector<8x384xf32> -> vector<8x384xf32>
    %6 = arith.addf %2, %5 : vector<8x384xf32>
    %c383_i32 = arith.constant 383 : i32
    %7 = tpu.dynamic_rotate %1 by %c383_i32 dim 1 : vector<8x384xf32>, i32 -> vector<8x384xf32>
    %c1 = arith.constant 1 : index
    %c0_6 = arith.constant 0 : index
    %c0_7 = arith.constant 0 : index
    %8 = vector.load %arg2[%c1, %c0_6, %c0_7] : memref<9x8x8xf32, #tpu.memory_space<vmem>>, vector<1x8x8xf32>
    %9 = vector.shape_cast %8 : vector<1x8x8xf32> to vector<8x8xf32>
    %cst_8 = arith.constant dense<0.000000e+00> : vector<8x384xf32>
    %10 = tpu.matmul %9, %7, %cst_8 {dimension_numbers = #tpu.dot_dimension_numbers<[1], [0], [0], [1], [0, 0, 1, 1], [], []>} : vector<8x8xf32>, vector<8x384xf32>, vector<8x384xf32> -> vector<8x384xf32>
    %11 = arith.addf %6, %10 : vector<8x384xf32>
    %c382_i32 = arith.constant 382 : i32
    %12 = tpu.dynamic_rotate %1 by %c382_i32 dim 1 : vector<8x384xf32>, i32 -> vector<8x384xf32>
    %c2 = arith.constant 2 : index
    %c0_9 = arith.constant 0 : index
    %c0_10 = arith.constant 0 : index
    %13 = vector.load %arg2[%c2, %c0_9, %c0_10] : memref<9x8x8xf32, #tpu.memory_space<vmem>>, vector<1x8x8xf32>
    %14 = vector.shape_cast %13 : vector<1x8x8xf32> to vector<8x8xf32>
    %cst_11 = arith.constant dense<0.000000e+00> : vector<8x384xf32>
    %15 = tpu.matmul %14, %12, %cst_11 {dimension_numbers = #tpu.dot_dimension_numbers<[1], [0], [0], [1], [0, 0, 1, 1], [], []>} : vector<8x8xf32>, vector<8x384xf32>, vector<8x384xf32> -> vector<8x384xf32>
    %16 = arith.addf %11, %15 : vector<8x384xf32>
    %c366_i32 = arith.constant 366 : i32
    %17 = tpu.dynamic_rotate %1 by %c366_i32 dim 1 : vector<8x384xf32>, i32 -> vector<8x384xf32>
    %c3 = arith.constant 3 : index
    %c0_12 = arith.constant 0 : index
    %c0_13 = arith.constant 0 : index
    %18 = vector.load %arg2[%c3, %c0_12, %c0_13] : memref<9x8x8xf32, #tpu.memory_space<vmem>>, vector<1x8x8xf32>
    %19 = vector.shape_cast %18 : vector<1x8x8xf32> to vector<8x8xf32>
    %cst_14 = arith.constant dense<0.000000e+00> : vector<8x384xf32>
    %20 = tpu.matmul %19, %17, %cst_14 {dimension_numbers = #tpu.dot_dimension_numbers<[1], [0], [0], [1], [0, 0, 1, 1], [], []>} : vector<8x8xf32>, vector<8x384xf32>, vector<8x384xf32> -> vector<8x384xf32>
    %21 = arith.addf %16, %20 : vector<8x384xf32>
    %c365_i32 = arith.constant 365 : i32
    %22 = tpu.dynamic_rotate %1 by %c365_i32 dim 1 : vector<8x384xf32>, i32 -> vector<8x384xf32>
    %c4 = arith.constant 4 : index
    %c0_15 = arith.constant 0 : index
    %c0_16 = arith.constant 0 : index
    %23 = vector.load %arg2[%c4, %c0_15, %c0_16] : memref<9x8x8xf32, #tpu.memory_space<vmem>>, vector<1x8x8xf32>
    %24 = vector.shape_cast %23 : vector<1x8x8xf32> to vector<8x8xf32>
    %cst_17 = arith.constant dense<0.000000e+00> : vector<8x384xf32>
    %25 = tpu.matmul %24, %22, %cst_17 {dimension_numbers = #tpu.dot_dimension_numbers<[1], [0], [0], [1], [0, 0, 1, 1], [], []>} : vector<8x8xf32>, vector<8x384xf32>, vector<8x384xf32> -> vector<8x384xf32>
    %26 = arith.addf %21, %25 : vector<8x384xf32>
    %c364_i32 = arith.constant 364 : i32
    %27 = tpu.dynamic_rotate %1 by %c364_i32 dim 1 : vector<8x384xf32>, i32 -> vector<8x384xf32>
    %c5 = arith.constant 5 : index
    %c0_18 = arith.constant 0 : index
    %c0_19 = arith.constant 0 : index
    %28 = vector.load %arg2[%c5, %c0_18, %c0_19] : memref<9x8x8xf32, #tpu.memory_space<vmem>>, vector<1x8x8xf32>
    %29 = vector.shape_cast %28 : vector<1x8x8xf32> to vector<8x8xf32>
    %cst_20 = arith.constant dense<0.000000e+00> : vector<8x384xf32>
    %30 = tpu.matmul %29, %27, %cst_20 {dimension_numbers = #tpu.dot_dimension_numbers<[1], [0], [0], [1], [0, 0, 1, 1], [], []>} : vector<8x8xf32>, vector<8x384xf32>, vector<8x384xf32> -> vector<8x384xf32>
    %31 = arith.addf %26, %30 : vector<8x384xf32>
    %c348_i32 = arith.constant 348 : i32
    %32 = tpu.dynamic_rotate %1 by %c348_i32 dim 1 : vector<8x384xf32>, i32 -> vector<8x384xf32>
    %c6 = arith.constant 6 : index
    %c0_21 = arith.constant 0 : index
    %c0_22 = arith.constant 0 : index
    %33 = vector.load %arg2[%c6, %c0_21, %c0_22] : memref<9x8x8xf32, #tpu.memory_space<vmem>>, vector<1x8x8xf32>
    %34 = vector.shape_cast %33 : vector<1x8x8xf32> to vector<8x8xf32>
    %cst_23 = arith.constant dense<0.000000e+00> : vector<8x384xf32>
    %35 = tpu.matmul %34, %32, %cst_23 {dimension_numbers = #tpu.dot_dimension_numbers<[1], [0], [0], [1], [0, 0, 1, 1], [], []>} : vector<8x8xf32>, vector<8x384xf32>, vector<8x384xf32> -> vector<8x384xf32>
    %36 = arith.addf %31, %35 : vector<8x384xf32>
    %c347_i32 = arith.constant 347 : i32
    %37 = tpu.dynamic_rotate %1 by %c347_i32 dim 1 : vector<8x384xf32>, i32 -> vector<8x384xf32>
    %c7 = arith.constant 7 : index
    %c0_24 = arith.constant 0 : index
    %c0_25 = arith.constant 0 : index
    %38 = vector.load %arg2[%c7, %c0_24, %c0_25] : memref<9x8x8xf32, #tpu.memory_space<vmem>>, vector<1x8x8xf32>
    %39 = vector.shape_cast %38 : vector<1x8x8xf32> to vector<8x8xf32>
    %cst_26 = arith.constant dense<0.000000e+00> : vector<8x384xf32>
    %40 = tpu.matmul %39, %37, %cst_26 {dimension_numbers = #tpu.dot_dimension_numbers<[1], [0], [0], [1], [0, 0, 1, 1], [], []>} : vector<8x8xf32>, vector<8x384xf32>, vector<8x384xf32> -> vector<8x384xf32>
    %41 = arith.addf %36, %40 : vector<8x384xf32>
    %c346_i32 = arith.constant 346 : i32
    %42 = tpu.dynamic_rotate %1 by %c346_i32 dim 1 : vector<8x384xf32>, i32 -> vector<8x384xf32>
    %c8 = arith.constant 8 : index
    %c0_27 = arith.constant 0 : index
    %c0_28 = arith.constant 0 : index
    %43 = vector.load %arg2[%c8, %c0_27, %c0_28] : memref<9x8x8xf32, #tpu.memory_space<vmem>>, vector<1x8x8xf32>
    %44 = vector.shape_cast %43 : vector<1x8x8xf32> to vector<8x8xf32>
    %cst_29 = arith.constant dense<0.000000e+00> : vector<8x384xf32>
    %45 = tpu.matmul %44, %42, %cst_29 {dimension_numbers = #tpu.dot_dimension_numbers<[1], [0], [0], [1], [0, 0, 1, 1], [], []>} : vector<8x8xf32>, vector<8x384xf32>, vector<8x384xf32> -> vector<8x384xf32>
    %46 = arith.addf %41, %45 : vector<8x384xf32>
    %c0_30 = arith.constant 0 : index
    %c0_31 = arith.constant 0 : index
    %47 = vector.load %arg3[%c0_30, %c0_31] : memref<8x1xf32, #tpu.memory_space<vmem>>, vector<8x1xf32>
    %48 = vector.broadcast %47 : vector<8x1xf32> to vector<8x384xf32>
    %49 = arith.addf %46, %48 : vector<8x384xf32>
    %c0_32 = arith.constant 0 : index
    %c0_33 = arith.constant 0 : index
    %c0_34 = arith.constant 0 : index
    %50 = vector.load %arg4[%c0_32, %c0_33, %c0_34] : memref<1x8x384xf32, #tpu.memory_space<vmem>>, vector<1x8x384xf32>
    %51 = vector.shape_cast %50 : vector<1x8x384xf32> to vector<8x384xf32>
    %52 = vector.shape_cast %49 : vector<8x384xf32> to vector<1x8x384xf32>
    tpu.vector_store %arg4[%c0_32, %c0_33, %c0_34], %52 {strides = array<i32>} : memref<1x8x384xf32, #tpu.memory_space<vmem>>, vector<1x8x384xf32>,
    return
  }
  func.func @transform_0(%arg0: i32) -> (i32, i32, i32) {
    %c0_i32 = arith.constant 0 : i32
    %c0_i32_0 = arith.constant 0 : i32
    %c0_i32_1 = arith.constant 0 : i32
    return %arg0, %c0_i32, %c0_i32_0 : i32, i32, i32
  }
  func.func @transform_1(%arg0: i32) -> (i32, i32, i32) {
    %c0_i32 = arith.constant 0 : i32
    %c0_i32_0 = arith.constant 0 : i32
    %c0_i32_1 = arith.constant 0 : i32
    %c0_i32_2 = arith.constant 0 : i32
    return %c0_i32, %c0_i32_0, %c0_i32_1 : i32, i32, i32
  }
  func.func @transform_2(%arg0: i32) -> (i32, i32) {
    %c0_i32 = arith.constant 0 : i32
    %c0_i32_0 = arith.constant 0 : i32
    %c0_i32_1 = arith.constant 0 : i32
    return %c0_i32, %c0_i32_0 : i32, i32
  }
  func.func @transform_3(%arg0: i32) -> (i32, i32, i32) {
    %c0_i32 = arith.constant 0 : i32
    %c0_i32_0 = arith.constant 0 : i32
    %c0_i32_1 = arith.constant 0 : i32
    return %arg0, %c0_i32, %c0_i32_0 : i32, i32, i32
  }
}

</mosaic_0001>

<llo_original>
// kernel: fft_conv1d_forward.1
$region0: #{fft_conv1d_forward.1}
  #allocation0 [shape = 'u32[]', space=smem, size = 0x4, offset = 0x4, fixed_abs, tag = 'smem constant byte address 0x4 - core index']
  #allocation1 [shape = 'u32[144,128]{1,0:T(1,128)}', space=vmem, size = 0x12000, scoped, tag = 'internal scratch']
  %s0 = inlined_call_operand.vmem [shape: f32[2,8,384], index: 0, kind: input, shape index: {}]
  %s1 = inlined_call_operand.vmem [shape: f32[9,8,8], index: 1, kind: input, shape index: {}]
  %s2 = inlined_call_operand.vmem [shape: f32[8,1], index: 2, kind: input, shape index: {}]
  %s3 = inlined_call_operand.vmem [shape: f32[2,8,384], index: 3, kind: output, shape index: {}]
  %s4 = sld [smem:[#allocation0]]
  $region45: #{fft_conv1d_forward.1} parent=0
    _
  %s6 = ssub.s32 1, %s4
  %s7 = scalar_select 0, %s6, %s4
  loop: start=0, step=1, limit=4
  $region2: #{fft_conv1d_forward.1} parent=0 // loop_pre_header
    _
  $region3: #{fft_conv1d_forward.1} parent=0 // loop_header
    %s9 = sphi 0, %s13
    %p10 = scmp.ge.s32.totalorder %s9, 4
    %s19 = sphi 0, %s21
    %s22 = sphi 0, %s19
    %s23 = sphi 0, %s22
    %s39 = sphi 0, %s23
    %s43 = sphi 0, %s43
    %s45 = sphi 0, %s43
    %s46 = sphi 0, %s45
    %s60 = sphi 0, %s46
    %s64 = sphi 0, %s64
    %s66 = sphi 0, %s64
    %s67 = sphi 0, %s66
    %s81 = sphi 0, %s67
    %s87 = sphi 0, %s89
    %s90 = sphi 0, %s87
    %s91 = sphi 0, %s90
    %s107 = sphi 0, %s91
  $region4: #{fft_conv1d_forward.1} parent=0 // loop_header_branch
    %12 = sbr.rel (%p10) target = $region8
  $region5: #{fft_conv1d_forward.1} parent=0 // loop_body
    %s14 = ssub.s32 %s9, 1
    %s15 = ssub.s32 %s9, 2
    %s16 = sadd.s32 %s9, 1
    %s17 = ssub.s32 %s9, %s16
    %p18 = scmp.eq.s32.totalorder %s17, 0
    %s20 = sadd.s32 %s19, 1
    %s21 = scalar_select %p18, %s19, %s20
    %p24 = pneg %p18
    %p25 = scmp.eq.s32.totalorder %s9, 1
    %p26 = por %p24, %p25
    %p27 = scmp.ne.s32.totalorder %s19, %s22
    %p28 = scmp.eq.s32.totalorder %s9, 0
    %p29 = por %p27, %p28
    %p30 = scmp.ne.s32.totalorder %s19, %s22
    %p31 = scmp.eq.s32.totalorder %s14, 1
    %p32 = por %p30, %p31
    %p33 = scmp.ne.s32.totalorder %s22, %s23
    %p34 = scmp.eq.s32.totalorder %s14, 0
    %p35 = por %p33, %p34
    %p36 = scmp.ne.s32.totalorder %s22, %s23
    %p37 = scmp.eq.s32.totalorder %s15, 1
    %p38 = por %p36, %p37
    %p40 = scmp.ne.s32.totalorder %s23, %s39
    %p41 = scmp.eq.s32.totalorder %s15, 0
    %p42 = por %p40, %p41
    %s44 = sadd.s32 %s43, 1
    %p47 = scmp.eq.s32.totalorder %s9, 1
    %p48 = scmp.ne.s32.totalorder %s43, %s45
    %p49 = scmp.eq.s32.totalorder %s9, 0
    %p50 = por %p48, %p49
    %p51 = scmp.ne.s32.totalorder %s43, %s45
    %p52 = scmp.eq.s32.totalorder %s14, 1
    %p53 = por %p51, %p52
    %p54 = scmp.ne.s32.totalorder %s45, %s46
    %p55 = scmp.eq.s32.totalorder %s14, 0
    %p56 = por %p54, %p55
    %p57 = scmp.ne.s32.totalorder %s45, %s46
    %p58 = scmp.eq.s32.totalorder %s15, 1
    %p59 = por %p57, %p58
    %p61 = scmp.ne.s32.totalorder %s46, %s60
    %p62 = scmp.eq.s32.totalorder %s15, 0
    %p63 = por %p61, %p62
    %s65 = sadd.s32 %s64, 1
    %p68 = scmp.eq.s32.totalorder %s9, 1
    %p69 = scmp.ne.s32.totalorder %s64, %s66
    %p70 = scmp.eq.s32.totalorder %s9, 0
    %p71 = por %p69, %p70
    %p72 = scmp.ne.s32.totalorder %s64, %s66
    %p73 = scmp.eq.s32.totalorder %s14, 1
    %p74 = por %p72, %p73
    %p75 = scmp.ne.s32.totalorder %s66, %s67
    %p76 = scmp.eq.s32.totalorder %s14, 0
    %p77 = por %p75, %p76
    %p78 = scmp.ne.s32.totalorder %s66, %s67
    %p79 = scmp.eq.s32.totalorder %s15, 1
    %p80 = por %p78, %p79
    %p82 = scmp.ne.s32.totalorder %s67, %s81
    %p83 = scmp.eq.s32.totalorder %s15, 0
    %p84 = por %p82, %p83
    %s85 = ssub.s32 %s9, %s16
    %p86 = scmp.eq.s32.totalorder %s85, 0
    %s88 = sadd.s32 %s87, 1
    %s89 = scalar_select %p86, %s87, %s88
    %p92 = pneg %p86
    %p93 = scmp.eq.s32.totalorder %s9, 1
    %p94 = por %p92, %p93
    %p95 = scmp.ne.s32.totalorder %s87, %s90
    %p96 = scmp.eq.s32.totalorder %s9, 0
    %p97 = por %p95, %p96
    %p98 = scmp.ne.s32.totalorder %s87, %s90
    %p99 = scmp.eq.s32.totalorder %s14, 1
    %p100 = por %p98, %p99
    %p101 = scmp.ne.s32.totalorder %s90, %s91
    %p102 = scmp.eq.s32.totalorder %s14, 0
    %p103 = por %p101, %p102
    %p104 = scmp.ne.s32.totalorder %s90, %s91
    %p105 = scmp.eq.s32.totalorder %s15, 1
    %p106 = por %p104, %p105
    %p108 = scmp.ne.s32.totalorder %s91, %s107
    %p109 = scmp.eq.s32.totalorder %s15, 0
    %p110 = por %p108, %p109
    %p111 = scmp.le.s32.totalorder 1, %s9
    %p112 = scmp.lt.s32.totalorder %s9, 3
    %p113 = pnand %p111, %p112
    %p114 = pneg %p113
    // Predicated region
    $region9: #{fft_conv1d_forward.1} parent=5 // pred_check
      _
    $region10: #{fft_conv1d_forward.1} parent=5 // pred_check_branch
      %116 = sbr.rel (%p113) target = $region12
    $region11: #{fft_conv1d_forward.1} parent=5 // pred_region
      %s117 = ssub.s32 %s9, 1
      // Predicated region
      $region13: #{fft_conv1d_forward.1} parent=11 // pred_check
        %p118 = pneg %p56
      $region14: #{fft_conv1d_forward.1} parent=11 // pred_check_branch
        %120 = sbr.rel (%p118) target = $region16
      $region15: #{fft_conv1d_forward.1} parent=11 // pred_region
        _
      $region16: #{fft_conv1d_forward.1} parent=11 // pred_fallthru
        _
      // Predicated region
      $region17: #{fft_conv1d_forward.1} parent=11 // pred_check
        %p121 = pneg %p77
      $region18: #{fft_conv1d_forward.1} parent=11 // pred_check_branch
        %123 = sbr.rel (%p121) target = $region20
      $region19: #{fft_conv1d_forward.1} parent=11 // pred_region
        _
      $region20: #{fft_conv1d_forward.1} parent=11 // pred_fallthru
        _
    $region12: #{fft_conv1d_forward.1} parent=5 // pred_fallthru
      _
    %p124 = scmp.lt.s32.totalorder %s9, 2
    // Predicated region
    $region21: #{fft_conv1d_forward.1} parent=5 // pred_check
      %p125 = pneg %p124
    $region22: #{fft_conv1d_forward.1} parent=5 // pred_check_branch
      %127 = sbr.rel (%p125) target = $region24
    $region23: #{fft_conv1d_forward.1} parent=5 // pred_region
      // Predicated region
      $region25: #{fft_conv1d_forward.1} parent=23 // pred_check
        %p128 = pneg %p29
      $region26: #{fft_conv1d_forward.1} parent=23 // pred_check_branch
        %130 = sbr.rel (%p128) target = $region28
      $region27: #{fft_conv1d_forward.1} parent=23 // pred_region
        %p131 = scmp.lt.s32.totalorder %s9, 1
        %s132 = scalar_select %p131, %s9, 1
        %s133 = smul.addr %s132, 3
        %s134 = smul.addr %s133, 8
        %s135 = scalar_lea.vmem %s0, %s134
      $region28: #{fft_conv1d_forward.1} parent=23 // pred_fallthru
        _
    $region24: #{fft_conv1d_forward.1} parent=5 // pred_fallthru
      _
    %p136 = scmp.le.s32.totalorder 1, %s9
    %p137 = scmp.lt.s32.totalorder %s9, 3
    %p138 = pnand %p136, %p137
    %p139 = pneg %p138
    // Predicated region
    $region29: #{fft_conv1d_forward.1} parent=5 // pred_check
      _
    $region30: #{fft_conv1d_forward.1} parent=5 // pred_check_branch
      %141 = sbr.rel (%p138) target = $region32
    $region31: #{fft_conv1d_forward.1} parent=5 // pred_region
      %s142 = ssub.s32 %s9, 1
      %p143 = scmp.lt.s32.totalorder %s14, 1
      %s144 = scalar_select %p143, %s14, 1
      %s145 = smul.addr %s144, 3
      %s146 = smul.addr %s145, 8
      %s147 = scalar_lea.vmem %s0, %s146
      %p148 = pneg %p35
      %p149 = pneg %p32
      %p150 = pneg %p56
      %p151 = pneg %p53
      %p152 = pneg %p77
      %p153 = pneg %p74
      %p154 = pneg %p103
      %p155 = pneg %p100
      %p156 = scmp.lt.s32.totalorder %s14, 1
      %s157 = scalar_select %p156, %s14, 1
      %s158 = smul.addr %s157, 3
      %s159 = smul.addr %s158, 8
      %s160 = scalar_lea.vmem %s3, %s159
      %p161 = scmp.lt.s32.totalorder %s14, 1
      %s162 = scalar_select %p161, %s14, 1
      %s163 = smul.addr %s162, 3
      %s164 = smul.addr %s163, 8
      %s165 = scalar_lea.vmem %s0, %s164
      %p166 = scmp.lt.s32.totalorder %s14, 1
      %s167 = scalar_select %p166, %s14, 1
      %s168 = smul.addr %s167, 3
      %s169 = smul.addr %s168, 8
      %s170 = scalar_lea.vmem %s3, %s169
      %v171 = vld [vmem:[%s165] sm:$0xff]
      %v172 = vld [vmem:[%s165 + $0x8] sm:$0xff]
      %v173 = vld [vmem:[%s165 + $0x10] sm:$0xff]
      %v174 = vld [vmem:[%s1] sm:$0xff]
      %175 = vrot.lane.b32.xlu0 %v171, 127
      %v176 = vpop.permute.xlu0 %175
      %177 = vrot.lane.b32.xlu0 %v172, 127
      %v178 = vpop.permute.xlu0 %177
      %179 = vrot.lane.b32.xlu0 %v173, 127
      %v180 = vpop.permute.xlu0 %179
      %v181 = vlaneseq
      %v182 = vand.u32 %v181, 127
      %vm183 = vcmp.lt.s32.totalorder %v182, 127
      %v184 = vsel %vm183, %v178, %v180
      %v185 = vsel %vm183, %v176, %v178
      %v186 = vsel %vm183, %v180, %v176
      %s187 = scalar_lea.vmem %s1, 8
      %v188 = vld [vmem:[%s187] sm:$0xff]
      %vm189 = vcmask 64512
      %v191 = vsel %vm189, %v188, 0
      %193 = vmatprep.subr.mxu0 %v184
      %194 = vmatpush1.msra.mxu0 %v185
      %195 = vmatprep.subr.mxu0 0.0
      %196 = vmatpush1.msra.mxu0 0.0
      %197 = vmatprep.subr.mxu0 0.0
      %198 = vmatpush1.msra.mxu0 0.0
      %199 = vmatprep.subr.mxu0 0.0
      %200 = vmatpush1.msra.mxu0 0.0
      %201 = vmatprep.subr.mxu0 0.0
      %202 = vmatpush1.msra.mxu0 0.0
      %203 = vmatprep.subr.mxu0 0.0
      %204 = vmatpush1.msra.mxu0 0.0
      %205 = vmatprep.subr.mxu0 0.0
      %206 = vmatpush1.msra.mxu0 0.0
      %207 = vmatprep.subr.mxu0 0.0
      %208 = vmatpush1.msra.mxu0 0.0
      %209 = vmatprep.subr.mxu0 0.0
      %210 = vmatpush1.msra.mxu0 0.0
      %211 = vmatprep.subr.mxu0 0.0
      %212 = vmatpush1.msra.mxu0 0.0
      %213 = vmatprep.subr.mxu0 0.0
      %214 = vmatpush1.msra.mxu0 0.0
      %215 = vmatprep.subr.mxu0 0.0
      %216 = vmatpush1.msra.mxu0 0.0
      %217 = vmatprep.subr.mxu0 0.0
      %218 = vmatpush1.msra.mxu0 0.0
      %219 = vmatprep.subr.mxu0 0.0
      %220 = vmatpush1.msra.mxu0 0.0
      %221 = vmatprep.subr.mxu0 0.0
      %222 = vmatpush1.msra.mxu0 0.0
      %223 = vmatprep.subr.mxu0 0.0
      %224 = vmatpush1.msra.mxu0 0.0
      %225 = vmatprep.subr.mxu0 0.0
      %226 = vmatpush1.msra.mxu0 0.0
      %227 = vmatprep.subr.mxu0 0.0
      %228 = vmatpush1.msra.mxu0 0.0
      %229 = vmatprep.subr.mxu0 0.0
      %230 = vmatpush1.msra.mxu0 0.0
      %231 = vmatprep.subr.mxu0 0.0
      %232 = vmatpush1.msra.mxu0 0.0
      %233 = vmatprep.subr.mxu0 0.0
      %234 = vmatpush1.msra.mxu0 0.0
      %235 = vmatprep.subr.mxu0 0.0
      %236 = vmatpush1.msra.mxu0 0.0
      %237 = vmatprep.subr.mxu0 0.0
      %238 = vmatpush1.msra.mxu0 0.0
      %239 = vmatprep.subr.mxu0 0.0
      %240 = vmatpush1.msra.mxu0 0.0
      %241 = vmatprep.subr.mxu0 0.0
      %242 = vmatpush1.msra.mxu0 0.0
      %243 = vmatprep.subr.mxu0 0.0
      %244 = vmatpush1.msra.mxu0 0.0
      %245 = vmatprep.subr.mxu0 0.0
      %246 = vmatpush1.msra.mxu0 0.0
      %247 = vmatprep.subr.mxu0 0.0
      %248 = vmatpush1.msra.mxu0 0.0
      %249 = vmatprep.subr.mxu0 0.0
      %250 = vmatpush1.msra.mxu0 0.0
      %251 = vmatprep.subr.mxu0 0.0
      %252 = vmatpush1.msra.mxu0 0.0
      %253 = vmatprep.subr.mxu0 0.0
      %254 = vmatpush1.msra.mxu0 0.0
      %255 = vmatprep.subr.mxu0 0.0
      %256 = vmatpush1.msra.mxu0 0.0
      %257 = vmatprep.mubr.f32.mxu0 0.0
      %258 = vmatmul.mubr.f32.gmra.mrb[0].mxu0 %v191
      %v259 = vpop.f32.mrb[0].mxu0
      %v260 = vadd.f32 0.0, %v259
      %v261 = vpop.f32.mrb[0].mxu0
      %v262 = vadd.f32 0.0, %v261
      %263 = vdwg.mxu0
      %264 = vmatprep.subr.mxu0 0.0
      %265 = vmatpush1.msra.mxu0 %v186
      %266 = vmatprep.subr.mxu0 0.0
      %267 = vmatpush1.msra.mxu0 0.0
      %268 = vmatprep.subr.mxu0 0.0
      %269 = vmatpush1.msra.mxu0 0.0
      %270 = vmatprep.subr.mxu0 0.0
      %271 = vmatpush1.msra.mxu0 0.0
      %272 = vmatprep.subr.mxu0 0.0
      %273 = vmatpush1.msra.mxu0 0.0
      %274 = vmatprep.subr.mxu0 0.0
      %275 = vmatpush1.msra.mxu0 0.0
      %276 = vmatprep.subr.mxu0 0.0
      %277 = vmatpush1.msra.mxu0 0.0
      %278 = vmatprep.subr.mxu0 0.0
      %279 = vmatpush1.msra.mxu0 0.0
      %280 = vmatprep.subr.mxu0 0.0
      %281 = vmatpush1.msra.mxu0 0.0
      %282 = vmatprep.subr.mxu0 0.0
      %283 = vmatpush1.msra.mxu0 0.0
      %284 = vmatprep.subr.mxu0 0.0
      %285 = vmatpush1.msra.mxu0 0.0
      %286 = vmatprep.subr.mxu0 0.0
      %287 = vmatpush1.msra.mxu0 0.0
      %288 = vmatprep.subr.mxu0 0.0
      %289 = vmatpush1.msra.mxu0 0.0
      %290 = vmatprep.subr.mxu0 0.0
      %291 = vmatpush1.msra.mxu0 0.0
      %292 = vmatprep.subr.mxu0 0.0
      %293 = vmatpush1.msra.mxu0 0.0
      %294 = vmatprep.subr.mxu0 0.0
      %295 = vmatpush1.msra.mxu0 0.0
      %296 = vmatprep.subr.mxu0 0.0
      %297 = vmatpush1.msra.mxu0 0.0
      %298 = vmatprep.subr.mxu0 0.0
      %299 = vmatpush1.msra.mxu0 0.0
      %300 = vmatprep.subr.mxu0 0.0
      %301 = vmatpush1.msra.mxu0 0.0
      %302 = vmatprep.subr.mxu0 0.0
      %303 = vmatpush1.msra.mxu0 0.0
      %304 = vmatprep.subr.mxu0 0.0
      %305 = vmatpush1.msra.mxu0 0.0
      %306 = vmatprep.subr.mxu0 0.0
      %307 = vmatpush1.msra.mxu0 0.0
      %308 = vmatprep.subr.mxu0 0.0
      %309 = vmatpush1.msra.mxu0 0.0
      %310 = vmatprep.subr.mxu0 0.0
      %311 = vmatpush1.msra.mxu0 0.0
      %312 = vmatprep.subr.mxu0 0.0
      %313 = vmatpush1.msra.mxu0 0.0
      %314 = vmatprep.subr.mxu0 0.0
      %315 = vmatpush1.msra.mxu0 0.0
      %316 = vmatprep.subr.mxu0 0.0
      %317 = vmatpush1.msra.mxu0 0.0
      %318 = vmatprep.subr.mxu0 0.0
      %319 = vmatpush1.msra.mxu0 0.0
      %320 = vmatprep.subr.mxu0 0.0
      %321 = vmatpush1.msra.mxu0 0.0
      %322 = vmatprep.subr.mxu0 0.0
      %323 = vmatpush1.msra.mxu0 0.0
      %324 = vmatprep.subr.mxu0 0.0
      %325 = vmatpush1.msra.mxu0 0.0
      %326 = vmatprep.subr.mxu0 0.0
      %327 = vmatpush1.msra.mxu0 0.0
      %328 = vmatprep.mubr.f32.mxu0 0.0
      %329 = vmatmul.mubr.f32.gmra.mrb[0].mxu0 %v191
      %v330 = vpop.f32.mrb[0].mxu0
      %v331 = vadd.f32 0.0, %v330
      %v332 = vpop.f32.mrb[0].mxu0
      %333 = vdwg.mxu0
      %v335 = vsel %vm189, %v174, 0
      %337 = vmatprep.subr.mxu0 %v172
      %338 = vmatpush1.msra.mxu0 %v171
      %339 = vmatprep.subr.mxu0 0.0
      %340 = vmatpush1.msra.mxu0 0.0
      %341 = vmatprep.subr.mxu0 0.0
      %342 = vmatpush1.msra.mxu0 0.0
      %343 = vmatprep.subr.mxu0 0.0
      %344 = vmatpush1.msra.mxu0 0.0
      %345 = vmatprep.subr.mxu0 0.0
      %346 = vmatpush1.msra.mxu0 0.0
      %347 = vmatprep.subr.mxu0 0.0
      %348 = vmatpush1.msra.mxu0 0.0
      %349 = vmatprep.subr.mxu0 0.0
      %350 = vmatpush1.msra.mxu0 0.0
      %351 = vmatprep.subr.mxu0 0.0
      %352 = vmatpush1.msra.mxu0 0.0
      %353 = vmatprep.subr.mxu0 0.0
      %354 = vmatpush1.msra.mxu0 0.0
      %355 = vmatprep.subr.mxu0 0.0
      %356 = vmatpush1.msra.mxu0 0.0
      %357 = vmatprep.subr.mxu0 0.0
      %358 = vmatpush1.msra.mxu0 0.0
      %359 = vmatprep.subr.mxu0 0.0
      %360 = vmatpush1.msra.mxu0 0.0
      %361 = vmatprep.subr.mxu0 0.0
      %362 = vmatpush1.msra.mxu0 0.0
      %363 = vmatprep.subr.mxu0 0.0
      %364 = vmatpush1.msra.mxu0 0.0
      %365 = vmatprep.subr.mxu0 0.0
      %366 = vmatpush1.msra.mxu0 0.0
      %367 = vmatprep.subr.mxu0 0.0
      %368 = vmatpush1.msra.mxu0 0.0
      %369 = vmatprep.subr.mxu0 0.0
      %370 = vmatpush1.msra.mxu0 0.0
      %371 = vmatprep.subr.mxu0 0.0
      %372 = vmatpush1.msra.mxu0 0.0
      %373 = vmatprep.subr.mxu0 0.0
      %374 = vmatpush1.msra.mxu0 0.0
      %375 = vmatprep.subr.mxu0 0.0
      %376 = vmatpush1.msra.mxu0 0.0
      %377 = vmatprep.subr.mxu0 0.0
      %378 = vmatpush1.msra.mxu0 0.0
      %379 = vmatprep.subr.mxu0 0.0
      %380 = vmatpush1.msra.mxu0 0.0
      %381 = vmatprep.subr.mxu0 0.0
      %382 = vmatpush1.msra.mxu0 0.0
      %383 = vmatprep.subr.mxu0 0.0
      %384 = vmatpush1.msra.mxu0 0.0
      %385 = vmatprep.subr.mxu0 0.0
      %386 = vmatpush1.msra.mxu0 0.0
      %387 = vmatprep.subr.mxu0 0.0
      %388 = vmatpush1.msra.mxu0 0.0
      %389 = vmatprep.subr.mxu0 0.0
      %390 = vmatpush1.msra.mxu0 0.0
      %391 = vmatprep.subr.mxu0 0.0
      %392 = vmatpush1.msra.mxu0 0.0
      %393 = vmatprep.subr.mxu0 0.0
      %394 = vmatpush1.msra.mxu0 0.0
      %395 = vmatprep.subr.mxu0 0.0
      %396 = vmatpush1.msra.mxu0 0.0
      %397 = vmatprep.subr.mxu0 0.0
      %398 = vmatpush1.msra.mxu0 0.0
      %399 = vmatprep.subr.mxu0 0.0
      %400 = vmatpush1.msra.mxu0 0.0
      %401 = vmatprep.mubr.f32.mxu0 0.0
      %402 = vmatmul.mubr.f32.gmra.mrb[0].mxu0 %v335
      %v403 = vpop.f32.mrb[0].mxu0
      %v404 = vadd.f32 %v260, %v403
      %v405 = vpop.f32.mrb[0].mxu0
      %v406 = vadd.f32 %v262, %v405
      %407 = vdwg.mxu0
      %408 = vmatprep.subr.mxu0 0.0
      %409 = vmatpush1.msra.mxu0 %v173
      %410 = vmatprep.subr.mxu0 0.0
      %411 = vmatpush1.msra.mxu0 0.0
      %412 = vmatprep.subr.mxu0 0.0
      %413 = vmatpush1.msra.mxu0 0.0
      %414 = vmatprep.subr.mxu0 0.0
      %415 = vmatpush1.msra.mxu0 0.0
      %416 = vmatprep.subr.mxu0 0.0
      %417 = vmatpush1.msra.mxu0 0.0
      %418 = vmatprep.subr.mxu0 0.0
      %419 = vmatpush1.msra.mxu0 0.0
      %420 = vmatprep.subr.mxu0 0.0
      %421 = vmatpush1.msra.mxu0 0.0
      %422 = vmatprep.subr.mxu0 0.0
      %423 = vmatpush1.msra.mxu0 0.0
      %424 = vmatprep.subr.mxu0 0.0
      %425 = vmatpush1.msra.mxu0 0.0
      %426 = vmatprep.subr.mxu0 0.0
      %427 = vmatpush1.msra.mxu0 0.0
      %428 = vmatprep.subr.mxu0 0.0
      %429 = vmatpush1.msra.mxu0 0.0
      %430 = vmatprep.subr.mxu0 0.0
      %431 = vmatpush1.msra.mxu0 0.0
      %432 = vmatprep.subr.mxu0 0.0
      %433 = vmatpush1.msra.mxu0 0.0
      %434 = vmatprep.subr.mxu0 0.0
      %435 = vmatpush1.msra.mxu0 0.0
      %436 = vmatprep.subr.mxu0 0.0
      %437 = vmatpush1.msra.mxu0 0.0
      %438 = vmatprep.subr.mxu0 0.0
      %439 = vmatpush1.msra.mxu0 0.0
      %440 = vmatprep.subr.mxu0 0.0
      %441 = vmatpush1.msra.mxu0 0.0
      %442 = vmatprep.subr.mxu0 0.0
      %443 = vmatpush1.msra.mxu0 0.0
      %444 = vmatprep.subr.mxu0 0.0
      %445 = vmatpush1.msra.mxu0 0.0
      %446 = vmatprep.subr.mxu0 0.0
      %447 = vmatpush1.msra.mxu0 0.0
      %448 = vmatprep.subr.mxu0 0.0
      %449 = vmatpush1.msra.mxu0 0.0
      %450 = vmatprep.subr.mxu0 0.0
      %451 = vmatpush1.msra.mxu0 0.0
      %452 = vmatprep.subr.mxu0 0.0
      %453 = vmatpush1.msra.mxu0 0.0
      %454 = vmatprep.subr.mxu0 0.0
      %455 = vmatpush1.msra.mxu0 0.0
      %456 = vmatprep.subr.mxu0 0.0
      %457 = vmatpush1.msra.mxu0 0.0
      %458 = vmatprep.subr.mxu0 0.0
      %459 = vmatpush1.msra.mxu0 0.0
      %460 = vmatprep.subr.mxu0 0.0
      %461 = vmatpush1.msra.mxu0 0.0
      %462 = vmatprep.subr.mxu0 0.0
      %463 = vmatpush1.msra.mxu0 0.0
      %464 = vmatprep.subr.mxu0 0.0
      %465 = vmatpush1.msra.mxu0 0.0
      %466 = vmatprep.subr.mxu0 0.0
      %467 = vmatpush1.msra.mxu0 0.0
      %468 = vmatprep.subr.mxu0 0.0
      %469 = vmatpush1.msra.mxu0 0.0
      %470 = vmatprep.subr.mxu0 0.0
      %471 = vmatpush1.msra.mxu0 0.0
      %472 = vmatprep.mubr.f32.mxu0 0.0
      %473 = vmatmul.mubr.f32.gmra.mrb[0].mxu0 %v335
      %v474 = vpop.f32.mrb[0].mxu0
      %v475 = vadd.f32 %v331, %v474
      %v476 = vpop.f32.mrb[0].mxu0
      %477 = vdwg.mxu0
      %478 = vrot.lane.b32.xlu0 %v171, 126
      %v479 = vpop.permute.xlu0 %478
      %480 = vrot.lane.b32.xlu0 %v172, 126
      %v481 = vpop.permute.xlu0 %480
      %482 = vrot.lane.b32.xlu0 %v173, 126
      %v483 = vpop.permute.xlu0 %482
      %vm484 = vcmp.lt.s32.totalorder %v182, 126
      %v485 = vsel %vm484, %v481, %v483
      %v486 = vsel %vm484, %v479, %v481
      %v487 = vsel %vm484, %v483, %v479
      %s488 = scalar_lea.vmem %s1, 16
      %v489 = vld [vmem:[%s488] sm:$0xff]
      %v491 = vsel %vm189, %v489, 0
      %493 = vmatprep.subr.mxu0 %v485
      %494 = vmatpush1.msra.mxu0 %v486
      %495 = vmatprep.subr.mxu0 0.0
      %496 = vmatpush1.msra.mxu0 0.0
      %497 = vmatprep.subr.mxu0 0.0
      %498 = vmatpush1.msra.mxu0 0.0
      %499 = vmatprep.subr.mxu0 0.0
      %500 = vmatpush1.msra.mxu0 0.0
      %501 = vmatprep.subr.mxu0 0.0
      %502 = vmatpush1.msra.mxu0 0.0
      %503 = vmatprep.subr.mxu0 0.0
      %504 = vmatpush1.msra.mxu0 0.0
      %505 = vmatprep.subr.mxu0 0.0
      %506 = vmatpush1.msra.mxu0 0.0
      %507 = vmatprep.subr.mxu0 0.0
      %508 = vmatpush1.msra.mxu0 0.0
      %509 = vmatprep.subr.mxu0 0.0
      %510 = vmatpush1.msra.mxu0 0.0
      %511 = vmatprep.subr.mxu0 0.0
      %512 = vmatpush1.msra.mxu0 0.0
      %513 = vmatprep.subr.mxu0 0.0
      %514 = vmatpush1.msra.mxu0 0.0
      %515 = vmatprep.subr.mxu0 0.0
      %516 = vmatpush1.msra.mxu0 0.0
      %517 = vmatprep.subr.mxu0 0.0
      %518 = vmatpush1.msra.mxu0 0.0
      %519 = vmatprep.subr.mxu0 0.0
      %520 = vmatpush1.msra.mxu0 0.0
      %521 = vmatprep.subr.mxu0 0.0
      %522 = vmatpush1.msra.mxu0 0.0
      %523 = vmatprep.subr.mxu0 0.0
      %524 = vmatpush1.msra.mxu0 0.0
      %525 = vmatprep.subr.mxu0 0.0
      %526 = vmatpush1.msra.mxu0 0.0
      %527 = vmatprep.subr.mxu0 0.0
      %528 = vmatpush1.msra.mxu0 0.0
      %529 = vmatprep.subr.mxu0 0.0
      %530 = vmatpush1.msra.mxu0 0.0
      %531 = vmatprep.subr.mxu0 0.0
      %532 = vmatpush1.msra.mxu0 0.0
      %533 = vmatprep.subr.mxu0 0.0
      %534 = vmatpush1.msra.mxu0 0.0
      %535 = vmatprep.subr.mxu0 0.0
      %536 = vmatpush1.msra.mxu0 0.0
      %537 = vmatprep.subr.mxu0 0.0
      %538 = vmatpush1.msra.mxu0 0.0
      %539 = vmatprep.subr.mxu0 0.0
      %540 = vmatpush1.msra.mxu0 0.0
      %541 = vmatprep.subr.mxu0 0.0
      %542 = vmatpush1.msra.mxu0 0.0
      %543 = vmatprep.subr.mxu0 0.0
      %544 = vmatpush1.msra.mxu0 0.0
      %545 = vmatprep.subr.mxu0 0.0
      %546 = vmatpush1.msra.mxu0 0.0
      %547 = vmatprep.subr.mxu0 0.0
      %548 = vmatpush1.msra.mxu0 0.0
      %549 = vmatprep.subr.mxu0 0.0
      %550 = vmatpush1.msra.mxu0 0.0
      %551 = vmatprep.subr.mxu0 0.0
      %552 = vmatpush1.msra.mxu0 0.0
      %553 = vmatprep.subr.mxu0 0.0
      %554 = vmatpush1.msra.mxu0 0.0
      %555 = vmatprep.subr.mxu0 0.0
      %556 = vmatpush1.msra.mxu0 0.0
      %557 = vmatprep.mubr.f32.mxu0 0.0
      %558 = vmatmul.mubr.f32.gmra.mrb[0].mxu0 %v491
      %v559 = vpop.f32.mrb[0].mxu0
      %v560 = vadd.f32 0.0, %v559
      %v561 = vpop.f32.mrb[0].mxu0
      %v562 = vadd.f32 0.0, %v561
      %563 = vdwg.mxu0
      %564 = vmatprep.subr.mxu0 0.0
      %565 = vmatpush1.msra.mxu0 %v487
      %566 = vmatprep.subr.mxu0 0.0
      %567 = vmatpush1.msra.mxu0 0.0
      %568 = vmatprep.subr.mxu0 0.0
      %569 = vmatpush1.msra.mxu0 0.0
      %570 = vmatprep.subr.mxu0 0.0
      %571 = vmatpush1.msra.mxu0 0.0
      %572 = vmatprep.subr.mxu0 0.0
      %573 = vmatpush1.msra.mxu0 0.0
      %574 = vmatprep.subr.mxu0 0.0
      %575 = vmatpush1.msra.mxu0 0.0
      %576 = vmatprep.subr.mxu0 0.0
      %577 = vmatpush1.msra.mxu0 0.0
      %578 = vmatprep.subr.mxu0 0.0
      %579 = vmatpush1.msra.mxu0 0.0
      %580 = vmatprep.subr.mxu0 0.0
      %581 = vmatpush1.msra.mxu0 0.0
      %582 = vmatprep.subr.mxu0 0.0
      %583 = vmatpush1.msra.mxu0 0.0
      %584 = vmatprep.subr.mxu0 0.0
      %585 = vmatpush1.msra.mxu0 0.0
      %586 = vmatprep.subr.mxu0 0.0
      %587 = vmatpush1.msra.mxu0 0.0
      %588 = vmatprep.subr.mxu0 0.0
      %589 = vmatpush1.msra.mxu0 0.0
      %590 = vmatprep.subr.mxu0 0.0
      %591 = vmatpush1.msra.mxu0 0.0
      %592 = vmatprep.subr.mxu0 0.0
      %593 = vmatpush1.msra.mxu0 0.0
      %594 = vmatprep.subr.mxu0 0.0
      %595 = vmatpush1.msra.mxu0 0.0
      %596 = vmatprep.subr.mxu0 0.0
      %597 = vmatpush1.msra.mxu0 0.0
      %598 = vmatprep.subr.mxu0 0.0
      %599 = vmatpush1.msra.mxu0 0.0
      %600 = vmatprep.subr.mxu0 0.0
      %601 = vmatpush1.msra.mxu0 0.0
      %602 = vmatprep.subr.mxu0 0.0
      %603 = vmatpush1.msra.mxu0 0.0
      %604 = vmatprep.subr.mxu0 0.0
      %605 = vmatpush1.msra.mxu0 0.0
      %606 = vmatprep.subr.mxu0 0.0
      %607 = vmatpush1.msra.mxu0 0.0
      %608 = vmatprep.subr.mxu0 0.0
      %609 = vmatpush1.msra.mxu0 0.0
      %610 = vmatprep.subr.mxu0 0.0
      %611 = vmatpush1.msra.mxu0 0.0
      %612 = vmatprep.subr.mxu0 0.0
      %613 = vmatpush1.msra.mxu0 0.0
      %614 = vmatprep.subr.mxu0 0.0
      %615 = vmatpush1.msra.mxu0 0.0
      %616 = vmatprep.subr.mxu0 0.0
      %617 = vmatpush1.msra.mxu0 0.0
      %618 = vmatprep.subr.mxu0 0.0
      %619 = vmatpush1.msra.mxu0 0.0
      %620 = vmatprep.subr.mxu0 0.0
      %621 = vmatpush1.msra.mxu0 0.0
      %622 = vmatprep.subr.mxu0 0.0
      %623 = vmatpush1.msra.mxu0 0.0
      %624 = vmatprep.subr.mxu0 0.0
      %625 = vmatpush1.msra.mxu0 0.0
      %626 = vmatprep.subr.mxu0 0.0
      %627 = vmatpush1.msra.mxu0 0.0
      %628 = vmatprep.mubr.f32.mxu0 0.0
      %629 = vmatmul.mubr.f32.gmra.mrb[0].mxu0 %v491
      %v630 = vpop.f32.mrb[0].mxu0
      %v631 = vadd.f32 0.0, %v630
      %v632 = vpop.f32.mrb[0].mxu0
      %633 = vdwg.mxu0
      %v634 = vadd.f32 %v404, %v560
      %v635 = vadd.f32 %v406, %v562
      %v636 = vadd.f32 %v475, %v631
      %637 = vrot.lane.b32.xlu0 %v171, 110
      %v638 = vpop.permute.xlu0 %637
      %639 = vrot.lane.b32.xlu0 %v172, 110
      %v640 = vpop.permute.xlu0 %639
      %641 = vrot.lane.b32.xlu0 %v173, 110
      %v642 = vpop.permute.xlu0 %641
      %vm643 = vcmp.lt.s32.totalorder %v182, 110
      %v644 = vsel %vm643, %v640, %v642
      %v645 = vsel %vm643, %v638, %v640
      %v646 = vsel %vm643, %v642, %v638
      %s647 = scalar_lea.vmem %s1, 24
      %v648 = vld [vmem:[%s647] sm:$0xff]
      %v650 = vsel %vm189, %v648, 0
      %652 = vmatprep.subr.mxu0 %v644
      %653 = vmatpush1.msra.mxu0 %v645
      %654 = vmatprep.subr.mxu0 0.0
      %655 = vmatpush1.msra.mxu0 0.0
      %656 = vmatprep.subr.mxu0 0.0
      %657 = vmatpush1.msra.mxu0 0.0
      %658 = vmatprep.subr.mxu0 0.0
      %659 = vmatpush1.msra.mxu0 0.0
      %660 = vmatprep.subr.mxu0 0.0
      %661 = vmatpush1.msra.mxu0 0.0
      %662 = vmatprep.subr.mxu0 0.0
      %663 = vmatpush1.msra.mxu0 0.0
      %664 = vmatprep.subr.mxu0 0.0
      %665 = vmatpush1.msra.mxu0 0.0
      %666 = vmatprep.subr.mxu0 0.0
      %667 = vmatpush1.msra.mxu0 0.0
      %668 = vmatprep.subr.mxu0 0.0
      %669 = vmatpush1.msra.mxu0 0.0
      %670 = vmatprep.subr.mxu0 0.0
      %671 = vmatpush1.msra.mxu0 0.0
      %672 = vmatprep.subr.mxu0 0.0
      %673 = vmatpush1.msra.mxu0 0.0
      %674 = vmatprep.subr.mxu0 0.0
      %675 = vmatpush1.msra.mxu0 0.0
      %676 = vmatprep.subr.mxu0 0.0
      %677 = vmatpush1.msra.mxu0 0.0
      %678 = vmatprep.subr.mxu0 0.0
      %679 = vmatpush1.msra.mxu0 0.0
      %680 = vmatprep.subr.mxu0 0.0
      %681 = vmatpush1.msra.mxu0 0.0
      %682 = vmatprep.subr.mxu0 0.0
      %683 = vmatpush1.msra.mxu0 0.0
      %684 = vmatprep.subr.mxu0 0.0
      %685 = vmatpush1.msra.mxu0 0.0
      %686 = vmatprep.subr.mxu0 0.0
      %687 = vmatpush1.msra.mxu0 0.0
      %688 = vmatprep.subr.mxu0 0.0
      %689 = vmatpush1.msra.mxu0 0.0
      %690 = vmatprep.subr.mxu0 0.0
      %691 = vmatpush1.msra.mxu0 0.0
      %692 = vmatprep.subr.mxu0 0.0
      %693 = vmatpush1.msra.mxu0 0.0
      %694 = vmatprep.subr.mxu0 0.0
      %695 = vmatpush1.msra.mxu0 0.0
      %696 = vmatprep.subr.mxu0 0.0
      %697 = vmatpush1.msra.mxu0 0.0
      %698 = vmatprep.subr.mxu0 0.0
      %699 = vmatpush1.msra.mxu0 0.0
      %700 = vmatprep.subr.mxu0 0.0
      %701 = vmatpush1.msra.mxu0 0.0
      %702 = vmatprep.subr.mxu0 0.0
      %703 = vmatpush1.msra.mxu0 0.0
      %704 = vmatprep.subr.mxu0 0.0
      %705 = vmatpush1.msra.mxu0 0.0
      %706 = vmatprep.subr.mxu0 0.0
      %707 = vmatpush1.msra.mxu0 0.0
      %708 = vmatprep.subr.mxu0 0.0
      %709 = vmatpush1.msra.mxu0 0.0
      %710 = vmatprep.subr.mxu0 0.0
      %711 = vmatpush1.msra.mxu0 0.0
      %712 = vmatprep.subr.mxu0 0.0
      %713 = vmatpush1.msra.mxu0 0.0
      %714 = vmatprep.subr.mxu0 0.0
      %715 = vmatpush1.msra.mxu0 0.0
      %716 = vmatprep.mubr.f32.mxu0 0.0
      %717 = vmatmul.mubr.f32.gmra.mrb[0].mxu0 %v650
      %v718 = vpop.f32.mrb[0].mxu0
      %v719 = vadd.f32 0.0, %v718
      %v720 = vpop.f32.mrb[0].mxu0
      %v721 = vadd.f32 0.0, %v720
      %722 = vdwg.mxu0
      %723 = vmatprep.subr.mxu0 0.0
      %724 = vmatpush1.msra.mxu0 %v646
      %725 = vmatprep.subr.mxu0 0.0
      %726 = vmatpush1.msra.mxu0 0.0
      %727 = vmatprep.subr.mxu0 0.0
      %728 = vmatpush1.msra.mxu0 0.0
      %729 = vmatprep.subr.mxu0 0.0
      %730 = vmatpush1.msra.mxu0 0.0
      %731 = vmatprep.subr.mxu0 0.0
      %732 = vmatpush1.msra.mxu0 0.0
      %733 = vmatprep.subr.mxu0 0.0
      %734 = vmatpush1.msra.mxu0 0.0
      %735 = vmatprep.subr.mxu0 0.0
      %736 = vmatpush1.msra.mxu0 0.0
      %737 = vmatprep.subr.mxu0 0.0
      %738 = vmatpush1.msra.mxu0 0.0
      %739 = vmatprep.subr.mxu0 0.0
      %740 = vmatpush1.msra.mxu0 0.0
      %741 = vmatprep.subr.mxu0 0.0
      %742 = vmatpush1.msra.mxu0 0.0
      %743 = vmatprep.subr.mxu0 0.0
      %744 = vmatpush1.msra.mxu0 0.0
      %745 = vmatprep.subr.mxu0 0.0
      %746 = vmatpush1.msra.mxu0 0.0
      %747 = vmatprep.subr.mxu0 0.0
      %748 = vmatpush1.msra.mxu0 0.0
      %749 = vmatprep.subr.mxu0 0.0
      %750 = vmatpush1.msra.mxu0 0.0
      %751 = vmatprep.subr.mxu0 0.0
      %752 = vmatpush1.msra.mxu0 0.0
      %753 = vmatprep.subr.mxu0 0.0
      %754 = vmatpush1.msra.mxu0 0.0
      %755 = vmatprep.subr.mxu0 0.0
      %756 = vmatpush1.msra.mxu0 0.0
      %757 = vmatprep.subr.mxu0 0.0
      %758 = vmatpush1.msra.mxu0 0.0
      %759 = vmatprep.subr.mxu0 0.0
      %760 = vmatpush1.msra.mxu0 0.0
      %761 = vmatprep.subr.mxu0 0.0
      %762 = vmatpush1.msra.mxu0 0.0
      %763 = vmatprep.subr.mxu0 0.0
      %764 = vmatpush1.msra.mxu0 0.0
      %765 = vmatprep.subr.mxu0 0.0
      %766 = vmatpush1.msra.mxu0 0.0
      %767 = vmatprep.subr.mxu0 0.0
      %768 = vmatpush1.msra.mxu0 0.0
      %769 = vmatprep.subr.mxu0 0.0
      %770 = vmatpush1.msra.mxu0 0.0
      %771 = vmatprep.subr.mxu0 0.0
      %772 = vmatpush1.msra.mxu0 0.0
      %773 = vmatprep.subr.mxu0 0.0
      %774 = vmatpush1.msra.mxu0 0.0
      %775 = vmatprep.subr.mxu0 0.0
      %776 = vmatpush1.msra.mxu0 0.0
      %777 = vmatprep.subr.mxu0 0.0
      %778 = vmatpush1.msra.mxu0 0.0
      %779 = vmatprep.subr.mxu0 0.0
      %780 = vmatpush1.msra.mxu0 0.0
      %781 = vmatprep.subr.mxu0 0.0
      %782 = vmatpush1.msra.mxu0 0.0
      %783 = vmatprep.subr.mxu0 0.0
      %784 = vmatpush1.msra.mxu0 0.0
      %785 = vmatprep.subr.mxu0 0.0
      %786 = vmatpush1.msra.mxu0 0.0
      %787 = vmatprep.mubr.f32.mxu0 0.0
      %788 = vmatmul.mubr.f32.gmra.mrb[0].mxu0 %v650
      %v789 = vpop.f32.mrb[0].mxu0
      %v790 = vadd.f32 0.0, %v789
      %v791 = vpop.f32.mrb[0].mxu0
      %792 = vdwg.mxu0
      %v793 = vadd.f32 %v634, %v719
      %v794 = vadd.f32 %v635, %v721
      %v795 = vadd.f32 %v636, %v790
      %796 = vrot.lane.b32.xlu0 %v171, 109
      %v797 = vpop.permute.xlu0 %796
      %798 = vrot.lane.b32.xlu0 %v172, 109
      %v799 = vpop.permute.xlu0 %798
      %800 = vrot.lane.b32.xlu0 %v173, 109
      %v801 = vpop.permute.xlu0 %800
      %vm802 = vcmp.lt.s32.totalorder %v182, 109
      %v803 = vsel %vm802, %v799, %v801
      %v804 = vsel %vm802, %v797, %v799
      %v805 = vsel %vm802, %v801, %v797
      %s806 = scalar_lea.vmem %s1, 32
      %v807 = vld [vmem:[%s806] sm:$0xff]
      %v809 = vsel %vm189, %v807, 0
      %811 = vmatprep.subr.mxu0 %v803
      %812 = vmatpush1.msra.mxu0 %v804
      %813 = vmatprep.subr.mxu0 0.0
      %814 = vmatpush1.msra.mxu0 0.0
      %815 = vmatprep.subr.mxu0 0.0
      %816 = vmatpush1.msra.mxu0 0.0
      %817 = vmatprep.subr.mxu0 0.0
      %818 = vmatpush1.msra.mxu0 0.0
      %819 = vmatprep.subr.mxu0 0.0
      %820 = vmatpush1.msra.mxu0 0.0
      %821 = vmatprep.subr.mxu0 0.0
      %822 = vmatpush1.msra.mxu0 0.0
      %823 = vmatprep.subr.mxu0 0.0
      %824 = vmatpush1.msra.mxu0 0.0
      %825 = vmatprep.subr.mxu0 0.0
      %826 = vmatpush1.msra.mxu0 0.0
      %827 = vmatprep.subr.mxu0 0.0
      %828 = vmatpush1.msra.mxu0 0.0
      %829 = vmatprep.subr.mxu0 0.0
      %830 = vmatpush1.msra.mxu0 0.0
      %831 = vmatprep.subr.mxu0 0.0
      %832 = vmatpush1.msra.mxu0 0.0
      %833 = vmatprep.subr.mxu0 0.0
      %834 = vmatpush1.msra.mxu0 0.0
      %835 = vmatprep.subr.mxu0 0.0
      %836 = vmatpush1.msra.mxu0 0.0
      %837 = vmatprep.subr.mxu0 0.0
      %838 = vmatpush1.msra.mxu0 0.0
      %839 = vmatprep.subr.mxu0 0.0
      %840 = vmatpush1.msra.mxu0 0.0
      %841 = vmatprep.subr.mxu0 0.0
      %842 = vmatpush1.msra.mxu0 0.0
      %843 = vmatprep.subr.mxu0 0.0
      %844 = vmatpush1.msra.mxu0 0.0
      %845 = vmatprep.subr.mxu0 0.0
      %846 = vmatpush1.msra.mxu0 0.0
      %847 = vmatprep.subr.mxu0 0.0
      %848 = vmatpush1.msra.mxu0 0.0
      %849 = vmatprep.subr.mxu0 0.0
      %850 = vmatpush1.msra.mxu0 0.0
      %851 = vmatprep.subr.mxu0 0.0
      %852 = vmatpush1.msra.mxu0 0.0
      %853 = vmatprep.subr.mxu0 0.0
      %854 = vmatpush1.msra.mxu0 0.0
      %855 = vmatprep.subr.mxu0 0.0
      %856 = vmatpush1.msra.mxu0 0.0
      %857 = vmatprep.subr.mxu0 0.0
      %858 = vmatpush1.msra.mxu0 0.0
      %859 = vmatprep.subr.mxu0 0.0
      %860 = vmatpush1.msra.mxu0 0.0
      %861 = vmatprep.subr.mxu0 0.0
      %862 = vmatpush1.msra.mxu0 0.0
      %863 = vmatprep.subr.mxu0 0.0
      %864 = vmatpush1.msra.mxu0 0.0
      %865 = vmatprep.subr.mxu0 0.0
      %866 = vmatpush1.msra.mxu0 0.0
      %867 = vmatprep.subr.mxu0 0.0
      %868 = vmatpush1.msra.mxu0 0.0
      %869 = vmatprep.subr.mxu0 0.0
      %870 = vmatpush1.msra.mxu0 0.0
      %871 = vmatprep.subr.mxu0 0.0
      %872 = vmatpush1.msra.mxu0 0.0
      %873 = vmatprep.subr.mxu0 0.0
      %874 = vmatpush1.msra.mxu0 0.0
      %875 = vmatprep.mubr.f32.mxu0 0.0
      %876 = vmatmul.mubr.f32.gmra.mrb[0].mxu0 %v809
      %v877 = vpop.f32.mrb[0].mxu0
      %v878 = vadd.f32 0.0, %v877
      %v879 = vpop.f32.mrb[0].mxu0
      %v880 = vadd.f32 0.0, %v879
      %881 = vdwg.mxu0
      %882 = vmatprep.subr.mxu0 0.0
      %883 = vmatpush1.msra.mxu0 %v805
      %884 = vmatprep.subr.mxu0 0.0
      %885 = vmatpush1.msra.mxu0 0.0
      %886 = vmatprep.subr.mxu0 0.0
      %887 = vmatpush1.msra.mxu0 0.0
      %888 = vmatprep.subr.mxu0 0.0
      %889 = vmatpush1.msra.mxu0 0.0
      %890 = vmatprep.subr.mxu0 0.0
      %891 = vmatpush1.msra.mxu0 0.0
      %892 = vmatprep.subr.mxu0 0.0
      %893 = vmatpush1.msra.mxu0 0.0
      %894 = vmatprep.subr.mxu0 0.0
      %895 = vmatpush1.msra.mxu0 0.0
      %896 = vmatprep.subr.mxu0 0.0
      %897 = vmatpush1.msra.mxu0 0.0
      %898 = vmatprep.subr.mxu0 0.0
      %899 = vmatpush1.msra.mxu0 0.0
      %900 = vmatprep.subr.mxu0 0.0
      %901 = vmatpush1.msra.mxu0 0.0
      %902 = vmatprep.subr.mxu0 0.0
      %903 = vmatpush1.msra.mxu0 0.0
      %904 = vmatprep.subr.mxu0 0.0
      %905 = vmatpush1.msra.mxu0 0.0
      %906 = vmatprep.subr.mxu0 0.0
      %907 = vmatpush1.msra.mxu0 0.0
      %908 = vmatprep.subr.mxu0 0.0
      %909 = vmatpush1.msra.mxu0 0.0
      %910 = vmatprep.subr.mxu0 0.0
      %911 = vmatpush1.msra.mxu0 0.0
      %912 = vmatprep.subr.mxu0 0.0
      %913 = vmatpush1.msra.mxu0 0.0
      %914 = vmatprep.subr.mxu0 0.0
      %915 = vmatpush1.msra.mxu0 0.0
      %916 = vmatprep.subr.mxu0 0.0
      %917 = vmatpush1.msra.mxu0 0.0
      %918 = vmatprep.subr.mxu0 0.0
      %919 = vmatpush1.msra.mxu0 0.0
      %920 = vmatprep.subr.mxu0 0.0
      %921 = vmatpush1.msra.mxu0 0.0
      %922 = vmatprep.subr.mxu0 0.0
      %923 = vmatpush1.msra.mxu0 0.0
      %924 = vmatprep.subr.mxu0 0.0
      %925 = vmatpush1.msra.mxu0 0.0
      %926 = vmatprep.subr.mxu0 0.0
      %927 = vmatpush1.msra.mxu0 0.0
      %928 = vmatprep.subr.mxu0 0.0
      %929 = vmatpush1.msra.mxu0 0.0
      %930 = vmatprep.subr.mxu0 0.0
      %931 = vmatpush1.msra.mxu0 0.0
      %932 = vmatprep.subr.mxu0 0.0
      %933 = vmatpush1.msra.mxu0 0.0
      %934 = vmatprep.subr.mxu0 0.0
      %935 = vmatpush1.msra.mxu0 0.0
      %936 = vmatprep.subr.mxu0 0.0
      %937 = vmatpush1.msra.mxu0 0.0
      %938 = vmatprep.subr.mxu0 0.0
      %939 = vmatpush1.msra.mxu0 0.0
      %940 = vmatprep.subr.mxu0 0.0
      %941 = vmatpush1.msra.mxu0 0.0
      %942 = vmatprep.subr.mxu0 0.0
      %943 = vmatpush1.msra.mxu0 0.0
      %944 = vmatprep.subr.mxu0 0.0
      %945 = vmatpush1.msra.mxu0 0.0
      %946 = vmatprep.mubr.f32.mxu0 0.0
      %947 = vmatmul.mubr.f32.gmra.mrb[0].mxu0 %v809
      %v948 = vpop.f32.mrb[0].mxu0
      %v949 = vadd.f32 0.0, %v948
      %v950 = vpop.f32.mrb[0].mxu0
      %951 = vdwg.mxu0
      %v952 = vadd.f32 %v793, %v878
      %v953 = vadd.f32 %v794, %v880
      %v954 = vadd.f32 %v795, %v949
      %955 = vrot.lane.b32.xlu0 %v171, 108
      %v956 = vpop.permute.xlu0 %955
      %957 = vrot.lane.b32.xlu0 %v172, 108
      %v958 = vpop.permute.xlu0 %957
      %959 = vrot.lane.b32.xlu0 %v173, 108
      %v960 = vpop.permute.xlu0 %959
      %vm961 = vcmp.lt.s32.totalorder %v182, 108
      %v962 = vsel %vm961, %v958, %v960
      %v963 = vsel %vm961, %v956, %v958
      %v964 = vsel %vm961, %v960, %v956
      %s965 = scalar_lea.vmem %s1, 40
      %v966 = vld [vmem:[%s965] sm:$0xff]
      %v968 = vsel %vm189, %v966, 0
      %970 = vmatprep.subr.mxu0 %v962
      %971 = vmatpush1.msra.mxu0 %v963
      %972 = vmatprep.subr.mxu0 0.0
      %973 = vmatpush1.msra.mxu0 0.0
      %974 = vmatprep.subr.mxu0 0.0
      %975 = vmatpush1.msra.mxu0 0.0
      %976 = vmatprep.subr.mxu0 0.0
      %977 = vmatpush1.msra.mxu0 0.0
      %978 = vmatprep.subr.mxu0 0.0
      %979 = vmatpush1.msra.mxu0 0.0
      %980 = vmatprep.subr.mxu0 0.0
      %981 = vmatpush1.msra.mxu0 0.0
      %982 = vmatprep.subr.mxu0 0.0
      %983 = vmatpush1.msra.mxu0 0.0
      %984 = vmatprep.subr.mxu0 0.0
      %985 = vmatpush1.msra.mxu0 0.0
      %986 = vmatprep.subr.mxu0 0.0
      %987 = vmatpush1.msra.mxu0 0.0
      %988 = vmatprep.subr.mxu0 0.0
      %989 = vmatpush1.msra.mxu0 0.0
      %990 = vmatprep.subr.mxu0 0.0
      %991 = vmatpush1.msra.mxu0 0.0
      %992 = vmatprep.subr.mxu0 0.0
      %993 = vmatpush1.msra.mxu0 0.0
      %994 = vmatprep.subr.mxu0 0.0
      %995 = vmatpush1.msra.mxu0 0.0
      %996 = vmatprep.subr.mxu0 0.0
      %997 = vmatpush1.msra.mxu0 0.0
      %998 = vmatprep.subr.mxu0 0.0
      %999 = vmatpush1.msra.mxu0 0.0
      %1000 = vmatprep.subr.mxu0 0.0
      %1001 = vmatpush1.msra.mxu0 0.0
      %1002 = vmatprep.subr.mxu0 0.0
      %1003 = vmatpush1.msra.mxu0 0.0
      %1004 = vmatprep.subr.mxu0 0.0
      %1005 = vmatpush1.msra.mxu0 0.0
      %1006 = vmatprep.subr.mxu0 0.0
      %1007 = vmatpush1.msra.mxu0 0.0
      %1008 = vmatprep.subr.mxu0 0.0
      %1009 = vmatpush1.msra.mxu0 0.0
      %1010 = vmatprep.subr.mxu0 0.0
      %1011 = vmatpush1.msra.mxu0 0.0
      %1012 = vmatprep.subr.mxu0 0.0
      %1013 = vmatpush1.msra.mxu0 0.0
      %1014 = vmatprep.subr.mxu0 0.0
      %1015 = vmatpush1.msra.mxu0 0.0
      %1016 = vmatprep.subr.mxu0 0.0
      %1017 = vmatpush1.msra.mxu0 0.0
      %1018 = vmatprep.subr.mxu0 0.0
      %1019 = vmatpush1.msra.mxu0 0.0
      %1020 = vmatprep.subr.mxu0 0.0
      %1021 = vmatpush1.msra.mxu0 0.0
      %1022 = vmatprep.subr.mxu0 0.0
      %1023 = vmatpush1.msra.mxu0 0.0
      %1024 = vmatprep.subr.mxu0 0.0
      %1025 = vmatpush1.msra.mxu0 0.0
      %1026 = vmatprep.subr.mxu0 0.0
      %1027 = vmatpush1.msra.mxu0 0.0
      %1028 = vmatprep.subr.mxu0 0.0
      %1029 = vmatpush1.msra.mxu0 0.0
      %1030 = vmatprep.subr.mxu0 0.0
      %1031 = vmatpush1.msra.mxu0 0.0
      %1032 = vmatprep.subr.mxu0 0.0
      %1033 = vmatpush1.msra.mxu0 0.0
      %1034 = vmatprep.mubr.f32.mxu0 0.0
      %1035 = vmatmul.mubr.f32.gmra.mrb[0].mxu0 %v968
      %v1036 = vpop.f32.mrb[0].mxu0
      %v1037 = vadd.f32 0.0, %v1036
      %v1038 = vpop.f32.mrb[0].mxu0
      %v1039 = vadd.f32 0.0, %v1038
      %1040 = vdwg.mxu0
      %1041 = vmatprep.subr.mxu0 0.0
      %1042 = vmatpush1.msra.mxu0 %v964
      %1043 = vmatprep.subr.mxu0 0.0
      %1044 = vmatpush1.msra.mxu0 0.0
      %1045 = vmatprep.subr.mxu0 0.0
      %1046 = vmatpush1.msra.mxu0 0.0
      %1047 = vmatprep.subr.mxu0 0.0
      %1048 = vmatpush1.msra.mxu0 0.0
      %1049 = vmatprep.subr.mxu0 0.0
      %1050 = vmatpush1.msra.mxu0 0.0
      %1051 = vmatprep.subr.mxu0 0.0
      %1052 = vmatpush1.msra.mxu0 0.0
      %1053 = vmatprep.subr.mxu0 0.0
      %1054 = vmatpush1.msra.mxu0 0.0
      %1055 = vmatprep.subr.mxu0 0.0
      %1056 = vmatpush1.msra.mxu0 0.0
      %1057 = vmatprep.subr.mxu0 0.0
      %1058 = vmatpush1.msra.mxu0 0.0
      %1059 = vmatprep.subr.mxu0 0.0
      %1060 = vmatpush1.msra.mxu0 0.0
      %1061 = vmatprep.subr.mxu0 0.0
      %1062 = vmatpush1.msra.mxu0 0.0
      %1063 = vmatprep.subr.mxu0 0.0
      %1064 = vmatpush1.msra.mxu0 0.0
      %1065 = vmatprep.subr.mxu0 0.0
      %1066 = vmatpush1.msra.mxu0 0.0
      %1067 = vmatprep.subr.mxu0 0.0
      %1068 = vmatpush1.msra.mxu0 0.0
      %1069 = vmatprep.subr.mxu0 0.0
      %1070 = vmatpush1.msra.mxu0 0.0
      %1071 = vmatprep.subr.mxu0 0.0
      %1072 = vmatpush1.msra.mxu0 0.0
      %1073 = vmatprep.subr.mxu0 0.0
      %1074 = vmatpush1.msra.mxu0 0.0
      %1075 = vmatprep.subr.mxu0 0.0
      %1076 = vmatpush1.msra.mxu0 0.0
      %1077 = vmatprep.subr.mxu0 0.0
      %1078 = vmatpush1.msra.mxu0 0.0
      %1079 = vmatprep.subr.mxu0 0.0
      %1080 = vmatpush1.msra.mxu0 0.0
      %1081 = vmatprep.subr.mxu0 0.0
      %1082 = vmatpush1.msra.mxu0 0.0
      %1083 = vmatprep.subr.mxu0 0.0
      %1084 = vmatpush1.msra.mxu0 0.0
      %1085 = vmatprep.subr.mxu0 0.0
      %1086 = vmatpush1.msra.mxu0 0.0
      %1087 = vmatprep.subr.mxu0 0.0
      %1088 = vmatpush1.msra.mxu0 0.0
      %1089 = vmatprep.subr.mxu0 0.0
      %1090 = vmatpush1.msra.mxu0 0.0
      %1091 = vmatprep.subr.mxu0 0.0
      %1092 = vmatpush1.msra.mxu0 0.0
      %1093 = vmatprep.subr.mxu0 0.0
      %1094 = vmatpush1.msra.mxu0 0.0
      %1095 = vmatprep.subr.mxu0 0.0
      %1096 = vmatpush1.msra.mxu0 0.0
      %1097 = vmatprep.subr.mxu0 0.0
      %1098 = vmatpush1.msra.mxu0 0.0
      %1099 = vmatprep.subr.mxu0 0.0
      %1100 = vmatpush1.msra.mxu0 0.0
      %1101 = vmatprep.subr.mxu0 0.0
      %1102 = vmatpush1.msra.mxu0 0.0
      %1103 = vmatprep.subr.mxu0 0.0
      %1104 = vmatpush1.msra.mxu0 0.0
      %1105 = vmatprep.mubr.f32.mxu0 0.0
      %1106 = vmatmul.mubr.f32.gmra.mrb[0].mxu0 %v968
      %v1107 = vpop.f32.mrb[0].mxu0
      %v1108 = vadd.f32 0.0, %v1107
      %v1109 = vpop.f32.mrb[0].mxu0
      %1110 = vdwg.mxu0
      %v1111 = vadd.f32 %v952, %v1037
      %v1112 = vadd.f32 %v953, %v1039
      %v1113 = vadd.f32 %v954, %v1108
      %1114 = vrot.lane.b32.xlu0 %v171, 92
      %v1115 = vpop.permute.xlu0 %1114
      %1116 = vrot.lane.b32.xlu0 %v172, 92
      %v1117 = vpop.permute.xlu0 %1116
      %1118 = vrot.lane.b32.xlu0 %v173, 92
      %v1119 = vpop.permute.xlu0 %1118
      %vm1120 = vcmp.lt.s32.totalorder %v182, 92
      %v1121 = vsel %vm1120, %v1117, %v1119
      %v1122 = vsel %vm1120, %v1115, %v1117
      %v1123 = vsel %vm1120, %v1119, %v1115
      %s1124 = scalar_lea.vmem %s1, 48
      %v1125 = vld [vmem:[%s1124] sm:$0xff]
      %v1127 = vsel %vm189, %v1125, 0
      %1129 = vmatprep.subr.mxu0 %v1121
      %1130 = vmatpush1.msra.mxu0 %v1122
      %1131 = vmatprep.subr.mxu0 0.0
      %1132 = vmatpush1.msra.mxu0 0.0
      %1133 = vmatprep.subr.mxu0 0.0
      %1134 = vmatpush1.msra.mxu0 0.0
      %1135 = vmatprep.subr.mxu0 0.0
      %1136 = vmatpush1.msra.mxu0 0.0
      %1137 = vmatprep.subr.mxu0 0.0
      %1138 = vmatpush1.msra.mxu0 0.0
      %1139 = vmatprep.subr.mxu0 0.0
      %1140 = vmatpush1.msra.mxu0 0.0
      %1141 = vmatprep.subr.mxu0 0.0
      %1142 = vmatpush1.msra.mxu0 0.0
      %1143 = vmatprep.subr.mxu0 0.0
      %1144 = vmatpush1.msra.mxu0 0.0
      %1145 = vmatprep.subr.mxu0 0.0
      %1146 = vmatpush1.msra.mxu0 0.0
      %1147 = vmatprep.subr.mxu0 0.0
      %1148 = vmatpush1.msra.mxu0 0.0
      %1149 = vmatprep.subr.mxu0 0.0
      %1150 = vmatpush1.msra.mxu0 0.0
      %1151 = vmatprep.subr.mxu0 0.0
      %1152 = vmatpush1.msra.mxu0 0.0
      %1153 = vmatprep.subr.mxu0 0.0
      %1154 = vmatpush1.msra.mxu0 0.0
      %1155 = vmatprep.subr.mxu0 0.0
      %1156 = vmatpush1.msra.mxu0 0.0
      %1157 = vmatprep.subr.mxu0 0.0
      %1158 = vmatpush1.msra.mxu0 0.0
      %1159 = vmatprep.subr.mxu0 0.0
      %1160 = vmatpush1.msra.mxu0 0.0
      %1161 = vmatprep.subr.mxu0 0.0
      %1162 = vmatpush1.msra.mxu0 0.0
      %1163 = vmatprep.subr.mxu0 0.0
      %1164 = vmatpush1.msra.mxu0 0.0
      %1165 = vmatprep.subr.mxu0 0.0
      %1166 = vmatpush1.msra.mxu0 0.0
      %1167 = vmatprep.subr.mxu0 0.0
      %1168 = vmatpush1.msra.mxu0 0.0
      %1169 = vmatprep.subr.mxu0 0.0
      %1170 = vmatpush1.msra.mxu0 0.0
      %1171 = vmatprep.subr.mxu0 0.0
      %1172 = vmatpush1.msra.mxu0 0.0
      %1173 = vmatprep.subr.mxu0 0.0
      %1174 = vmatpush1.msra.mxu0 0.0
      %1175 = vmatprep.subr.mxu0 0.0
      %1176 = vmatpush1.msra.mxu0 0.0
      %1177 = vmatprep.subr.mxu0 0.0
      %1178 = vmatpush1.msra.mxu0 0.0
      %1179 = vmatprep.subr.mxu0 0.0
      %1180 = vmatpush1.msra.mxu0 0.0
      %1181 = vmatprep.subr.mxu0 0.0
      %1182 = vmatpush1.msra.mxu0 0.0
      %1183 = vmatprep.subr.mxu0 0.0
      %1184 = vmatpush1.msra.mxu0 0.0
      %1185 = vmatprep.subr.mxu0 0.0
      %1186 = vmatpush1.msra.mxu0 0.0
      %1187 = vmatprep.subr.mxu0 0.0
      %1188 = vmatpush1.msra.mxu0 0.0
      %1189 = vmatprep.subr.mxu0 0.0
      %1190 = vmatpush1.msra.mxu0 0.0
      %1191 = vmatprep.subr.mxu0 0.0
      %1192 = vmatpush1.msra.mxu0 0.0
      %1193 = vmatprep.mubr.f32.mxu0 0.0
      %1194 = vmatmul.mubr.f32.gmra.mrb[0].mxu0 %v1127
      %v1195 = vpop.f32.mrb[0].mxu0
      %v1196 = vadd.f32 0.0, %v1195
      %v1197 = vpop.f32.mrb[0].mxu0
      %v1198 = vadd.f32 0.0, %v1197
      %1199 = vdwg.mxu0
      %1200 = vmatprep.subr.mxu0 0.0
      %1201 = vmatpush1.msra.mxu0 %v1123
      %1202 = vmatprep.subr.mxu0 0.0
      %1203 = vmatpush1.msra.mxu0 0.0
      %1204 = vmatprep.subr.mxu0 0.0
      %1205 = vmatpush1.msra.mxu0 0.0
      %1206 = vmatprep.subr.mxu0 0.0
      %1207 = vmatpush1.msra.mxu0 0.0
      %1208 = vmatprep.subr.mxu0 0.0
      %1209 = vmatpush1.msra.mxu0 0.0
      %1210 = vmatprep.subr.mxu0 0.0
      %1211 = vmatpush1.msra.mxu0 0.0
      %1212 = vmatprep.subr.mxu0 0.0
      %1213 = vmatpush1.msra.mxu0 0.0
      %1214 = vmatprep.subr.mxu0 0.0
      %1215 = vmatpush1.msra.mxu0 0.0
      %1216 = vmatprep.subr.mxu0 0.0
      %1217 = vmatpush1.msra.mxu0 0.0
      %1218 = vmatprep.subr.mxu0 0.0
      %1219 = vmatpush1.msra.mxu0 0.0
      %1220 = vmatprep.subr.mxu0 0.0
      %1221 = vmatpush1.msra.mxu0 0.0
      %1222 = vmatprep.subr.mxu0 0.0
      %1223 = vmatpush1.msra.mxu0 0.0
      %1224 = vmatprep.subr.mxu0 0.0
      %1225 = vmatpush1.msra.mxu0 0.0
      %1226 = vmatprep.subr.mxu0 0.0
      %1227 = vmatpush1.msra.mxu0 0.0
      %1228 = vmatprep.subr.mxu0 0.0
      %1229 = vmatpush1.msra.mxu0 0.0
      %1230 = vmatprep.subr.mxu0 0.0
      %1231 = vmatpush1.msra.mxu0 0.0
      %1232 = vmatprep.subr.mxu0 0.0
      %1233 = vmatpush1.msra.mxu0 0.0
      %1234 = vmatprep.subr.mxu0 0.0
      %1235 = vmatpush1.msra.mxu0 0.0
      %1236 = vmatprep.subr.mxu0 0.0
      %1237 = vmatpush1.msra.mxu0 0.0
      %1238 = vmatprep.subr.mxu0 0.0
      %1239 = vmatpush1.msra.mxu0 0.0
      %1240 = vmatprep.subr.mxu0 0.0
      %1241 = vmatpush1.msra.mxu0 0.0
      %1242 = vmatprep.subr.mxu0 0.0
      %1243 = vmatpush1.msra.mxu0 0.0
      %1244 = vmatprep.subr.mxu0 0.0
      %1245 = vmatpush1.msra.mxu0 0.0
      %1246 = vmatprep.subr.mxu0 0.0
      %1247 = vmatpush1.msra.mxu0 0.0
      %1248 = vmatprep.subr.mxu0 0.0
      %1249 = vmatpush1.msra.mxu0 0.0
      %1250 = vmatprep.subr.mxu0 0.0
      %1251 = vmatpush1.msra.mxu0 0.0
      %1252 = vmatprep.subr.mxu0 0.0
      %1253 = vmatpush1.msra.mxu0 0.0
      %1254 = vmatprep.subr.mxu0 0.0
      %1255 = vmatpush1.msra.mxu0 0.0
      %1256 = vmatprep.subr.mxu0 0.0
      %1257 = vmatpush1.msra.mxu0 0.0
      %1258 = vmatprep.subr.mxu0 0.0
      %1259 = vmatpush1.msra.mxu0 0.0
      %1260 = vmatprep.subr.mxu0 0.0
      %1261 = vmatpush1.msra.mxu0 0.0
      %1262 = vmatprep.subr.mxu0 0.0
      %1263 = vmatpush1.msra.mxu0 0.0
      %1264 = vmatprep.mubr.f32.mxu0 0.0
      %1265 = vmatmul.mubr.f32.gmra.mrb[0].mxu0 %v1127
      %v1266 = vpop.f32.mrb[0].mxu0
      %v1267 = vadd.f32 0.0, %v1266
      %v1268 = vpop.f32.mrb[0].mxu0
      %1269 = vdwg.mxu0
      %v1270 = vadd.f32 %v1111, %v1196
      %v1271 = vadd.f32 %v1112, %v1198
      %v1272 = vadd.f32 %v1113, %v1267
      %1273 = vrot.lane.b32.xlu0 %v171, 91
      %v1274 = vpop.permute.xlu0 %1273
      %1275 = vrot.lane.b32.xlu0 %v172, 91
      %v1276 = vpop.permute.xlu0 %1275
      %1277 = vrot.lane.b32.xlu0 %v173, 91
      %v1278 = vpop.permute.xlu0 %1277
      %vm1279 = vcmp.lt.s32.totalorder %v182, 91
      %v1280 = vsel %vm1279, %v1276, %v1278
      %v1281 = vsel %vm1279, %v1274, %v1276
      %v1282 = vsel %vm1279, %v1278, %v1274
      %s1283 = scalar_lea.vmem %s1, 56
      %v1284 = vld [vmem:[%s1283] sm:$0xff]
      %v1286 = vsel %vm189, %v1284, 0
      %1288 = vmatprep.subr.mxu0 %v1280
      %1289 = vmatpush1.msra.mxu0 %v1281
      %1290 = vmatprep.subr.mxu0 0.0
      %1291 = vmatpush1.msra.mxu0 0.0
      %1292 = vmatprep.subr.mxu0 0.0
      %1293 = vmatpush1.msra.mxu0 0.0
      %1294 = vmatprep.subr.mxu0 0.0
      %1295 = vmatpush1.msra.mxu0 0.0
      %1296 = vmatprep.subr.mxu0 0.0
      %1297 = vmatpush1.msra.mxu0 0.0
      %1298 = vmatprep.subr.mxu0 0.0
      %1299 = vmatpush1.msra.mxu0 0.0
      %1300 = vmatprep.subr.mxu0 0.0
      %1301 = vmatpush1.msra.mxu0 0.0
      %1302 = vmatprep.subr.mxu0 0.0
      %1303 = vmatpush1.msra.mxu0 0.0
      %1304 = vmatprep.subr.mxu0 0.0
      %1305 = vmatpush1.msra.mxu0 0.0
      %1306 = vmatprep.subr.mxu0 0.0
      %1307 = vmatpush1.msra.mxu0 0.0
      %1308 = vmatprep.subr.mxu0 0.0
      %1309 = vmatpush1.msra.mxu0 0.0
      %1310 = vmatprep.subr.mxu0 0.0
      %1311 = vmatpush1.msra.mxu0 0.0
      %1312 = vmatprep.subr.mxu0 0.0
      %1313 = vmatpush1.msra.mxu0 0.0
      %1314 = vmatprep.subr.mxu0 0.0
      %1315 = vmatpush1.msra.mxu0 0.0
      %1316 = vmatprep.subr.mxu0 0.0
      %1317 = vmatpush1.msra.mxu0 0.0
      %1318 = vmatprep.subr.mxu0 0.0
      %1319 = vmatpush1.msra.mxu0 0.0
      %1320 = vmatprep.subr.mxu0 0.0
      %1321 = vmatpush1.msra.mxu0 0.0
      %1322 = vmatprep.subr.mxu0 0.0
      %1323 = vmatpush1.msra.mxu0 0.0
      %1324 = vmatprep.subr.mxu0 0.0
      %1325 = vmatpush1.msra.mxu0 0.0
      %1326 = vmatprep.subr.mxu0 0.0
      %1327 = vmatpush1.msra.mxu0 0.0
      %1328 = vmatprep.subr.mxu0 0.0
      %1329 = vmatpush1.msra.mxu0 0.0
      %1330 = vmatprep.subr.mxu0 0.0
      %1331 = vmatpush1.msra.mxu0 0.0
      %1332 = vmatprep.subr.mxu0 0.0
      %1333 = vmatpush1.msra.mxu0 0.0
      %1334 = vmatprep.subr.mxu0 0.0
      %1335 = vmatpush1.msra.mxu0 0.0
      %1336 = vmatprep.subr.mxu0 0.0
      %1337 = vmatpush1.msra.mxu0 0.0
      %1338 = vmatprep.subr.mxu0 0.0
      %1339 = vmatpush1.msra.mxu0 0.0
      %1340 = vmatprep.subr.mxu0 0.0
      %1341 = vmatpush1.msra.mxu0 0.0
      %1342 = vmatprep.subr.mxu0 0.0
      %1343 = vmatpush1.msra.mxu0 0.0
      %1344 = vmatprep.subr.mxu0 0.0
      %1345 = vmatpush1.msra.mxu0 0.0
      %1346 = vmatprep.subr.mxu0 0.0
      %1347 = vmatpush1.msra.mxu0 0.0
      %1348 = vmatprep.subr.mxu0 0.0
      %1349 = vmatpush1.msra.mxu0 0.0
      %1350 = vmatprep.subr.mxu0 0.0
      %1351 = vmatpush1.msra.mxu0 0.0
      %1352 = vmatprep.mubr.f32.mxu0 0.0
      %1353 = vmatmul.mubr.f32.gmra.mrb[0].mxu0 %v1286
      %v1354 = vpop.f32.mrb[0].mxu0
      %v1355 = vadd.f32 0.0, %v1354
      %v1356 = vpop.f32.mrb[0].mxu0
      %v1357 = vadd.f32 0.0, %v1356
      %1358 = vdwg.mxu0
      %1359 = vmatprep.subr.mxu0 0.0
      %1360 = vmatpush1.msra.mxu0 %v1282
      %1361 = vmatprep.subr.mxu0 0.0
      %1362 = vmatpush1.msra.mxu0 0.0
      %1363 = vmatprep.subr.mxu0 0.0
      %1364 = vmatpush1.msra.mxu0 0.0
      %1365 = vmatprep.subr.mxu0 0.0
      %1366 = vmatpush1.msra.mxu0 0.0
      %1367 = vmatprep.subr.mxu0 0.0
      %1368 = vmatpush1.msra.mxu0 0.0
      %1369 = vmatprep.subr.mxu0 0.0
      %1370 = vmatpush1.msra.mxu0 0.0
      %1371 = vmatprep.subr.mxu0 0.0
      %1372 = vmatpush1.msra.mxu0 0.0
      %1373 = vmatprep.subr.mxu0 0.0
      %1374 = vmatpush1.msra.mxu0 0.0
      %1375 = vmatprep.subr.mxu0 0.0
      %1376 = vmatpush1.msra.mxu0 0.0
      %1377 = vmatprep.subr.mxu0 0.0
      %1378 = vmatpush1.msra.mxu0 0.0
      %1379 = vmatprep.subr.mxu0 0.0
      %1380 = vmatpush1.msra.mxu0 0.0
      %1381 = vmatprep.subr.mxu0 0.0
      %1382 = vmatpush1.msra.mxu0 0.0
      %1383 = vmatprep.subr.mxu0 0.0
      %1384 = vmatpush1.msra.mxu0 0.0
      %1385 = vmatprep.subr.mxu0 0.0
      %1386 = vmatpush1.msra.mxu0 0.0
      %1387 = vmatprep.subr.mxu0 0.0
      %1388 = vmatpush1.msra.mxu0 0.0
      %1389 = vmatprep.subr.mxu0 0.0
      %1390 = vmatpush1.msra.mxu0 0.0
      %1391 = vmatprep.subr.mxu0 0.0
      %1392 = vmatpush1.msra.mxu0 0.0
      %1393 = vmatprep.subr.mxu0 0.0
      %1394 = vmatpush1.msra.mxu0 0.0
      %1395 = vmatprep.subr.mxu0 0.0
      %1396 = vmatpush1.msra.mxu0 0.0
      %1397 = vmatprep.subr.mxu0 0.0
      %1398 = vmatpush1.msra.mxu0 0.0
      %1399 = vmatprep.subr.mxu0 0.0
      %1400 = vmatpush1.msra.mxu0 0.0
      %1401 = vmatprep.subr.mxu0 0.0
      %1402 = vmatpush1.msra.mxu0 0.0
      %1403 = vmatprep.subr.mxu0 0.0
      %1404 = vmatpush1.msra.mxu0 0.0
      %1405 = vmatprep.subr.mxu0 0.0
      %1406 = vmatpush1.msra.mxu0 0.0
      %1407 = vmatprep.subr.mxu0 0.0
      %1408 = vmatpush1.msra.mxu0 0.0
      %1409 = vmatprep.subr.mxu0 0.0
      %1410 = vmatpush1.msra.mxu0 0.0
      %1411 = vmatprep.subr.mxu0 0.0
      %1412 = vmatpush1.msra.mxu0 0.0
      %1413 = vmatprep.subr.mxu0 0.0
      %1414 = vmatpush1.msra.mxu0 0.0
      %1415 = vmatprep.subr.mxu0 0.0
      %1416 = vmatpush1.msra.mxu0 0.0
      %1417 = vmatprep.subr.mxu0 0.0
      %1418 = vmatpush1.msra.mxu0 0.0
      %1419 = vmatprep.subr.mxu0 0.0
      %1420 = vmatpush1.msra.mxu0 0.0
      %1421 = vmatprep.subr.mxu0 0.0
      %1422 = vmatpush1.msra.mxu0 0.0
      %1423 = vmatprep.mubr.f32.mxu0 0.0
      %1424 = vmatmul.mubr.f32.gmra.mrb[0].mxu0 %v1286
      %v1425 = vpop.f32.mrb[0].mxu0
      %v1426 = vadd.f32 0.0, %v1425
      %v1427 = vpop.f32.mrb[0].mxu0
      %1428 = vdwg.mxu0
      %v1429 = vadd.f32 %v1270, %v1355
      %v1430 = vadd.f32 %v1271, %v1357
      %v1431 = vadd.f32 %v1272, %v1426
      %1432 = vrot.lane.b32.xlu0 %v171, 90
      %v1433 = vpop.permute.xlu0 %1432
      %1434 = vrot.lane.b32.xlu0 %v172, 90
      %v1435 = vpop.permute.xlu0 %1434
      %1436 = vrot.lane.b32.xlu0 %v173, 90
      %v1437 = vpop.permute.xlu0 %1436
      %vm1438 = vcmp.lt.s32.totalorder %v182, 90
      %v1439 = vsel %vm1438, %v1435, %v1437
      %v1440 = vsel %vm1438, %v1433, %v1435
      %v1441 = vsel %vm1438, %v1437, %v1433
      %s1442 = scalar_lea.vmem %s1, 64
      %v1443 = vld [vmem:[%s1442] sm:$0xff]
      %v1445 = vsel %vm189, %v1443, 0
      %1447 = vmatprep.subr.mxu0 %v1439
      %1448 = vmatpush1.msra.mxu0 %v1440
      %1449 = vmatprep.subr.mxu0 0.0
      %1450 = vmatpush1.msra.mxu0 0.0
      %1451 = vmatprep.subr.mxu0 0.0
      %1452 = vmatpush1.msra.mxu0 0.0
      %1453 = vmatprep.subr.mxu0 0.0
      %1454 = vmatpush1.msra.mxu0 0.0
      %1455 = vmatprep.subr.mxu0 0.0
      %1456 = vmatpush1.msra.mxu0 0.0
      %1457 = vmatprep.subr.mxu0 0.0
      %1458 = vmatpush1.msra.mxu0 0.0
      %1459 = vmatprep.subr.mxu0 0.0
      %1460 = vmatpush1.msra.mxu0 0.0
      %1461 = vmatprep.subr.mxu0 0.0
      %1462 = vmatpush1.msra.mxu0 0.0
      %1463 = vmatprep.subr.mxu0 0.0
      %1464 = vmatpush1.msra.mxu0 0.0
      %1465 = vmatprep.subr.mxu0 0.0
      %1466 = vmatpush1.msra.mxu0 0.0
      %1467 = vmatprep.subr.mxu0 0.0
      %1468 = vmatpush1.msra.mxu0 0.0
      %1469 = vmatprep.subr.mxu0 0.0
      %1470 = vmatpush1.msra.mxu0 0.0
      %1471 = vmatprep.subr.mxu0 0.0
      %1472 = vmatpush1.msra.mxu0 0.0
      %1473 = vmatprep.subr.mxu0 0.0
      %1474 = vmatpush1.msra.mxu0 0.0
      %1475 = vmatprep.subr.mxu0 0.0
      %1476 = vmatpush1.msra.mxu0 0.0
      %1477 = vmatprep.subr.mxu0 0.0
      %1478 = vmatpush1.msra.mxu0 0.0
      %1479 = vmatprep.subr.mxu0 0.0
      %1480 = vmatpush1.msra.mxu0 0.0
      %1481 = vmatprep.subr.mxu0 0.0
      %1482 = vmatpush1.msra.mxu0 0.0
      %1483 = vmatprep.subr.mxu0 0.0
      %1484 = vmatpush1.msra.mxu0 0.0
      %1485 = vmatprep.subr.mxu0 0.0
      %1486 = vmatpush1.msra.mxu0 0.0
      %1487 = vmatprep.subr.mxu0 0.0
      %1488 = vmatpush1.msra.mxu0 0.0
      %1489 = vmatprep.subr.mxu0 0.0
      %1490 = vmatpush1.msra.mxu0 0.0
      %1491 = vmatprep.subr.mxu0 0.0
      %1492 = vmatpush1.msra.mxu0 0.0
      %1493 = vmatprep.subr.mxu0 0.0
      %1494 = vmatpush1.msra.mxu0 0.0
      %1495 = vmatprep.subr.mxu0 0.0
      %1496 = vmatpush1.msra.mxu0 0.0
      %1497 = vmatprep.subr.mxu0 0.0
      %1498 = vmatpush1.msra.mxu0 0.0
      %1499 = vmatprep.subr.mxu0 0.0
      %1500 = vmatpush1.msra.mxu0 0.0
      %1501 = vmatprep.subr.mxu0 0.0
      %1502 = vmatpush1.msra.mxu0 0.0
      %1503 = vmatprep.subr.mxu0 0.0
      %1504 = vmatpush1.msra.mxu0 0.0
      %1505 = vmatprep.subr.mxu0 0.0
      %1506 = vmatpush1.msra.mxu0 0.0
      %1507 = vmatprep.subr.mxu0 0.0
      %1508 = vmatpush1.msra.mxu0 0.0
      %1509 = vmatprep.subr.mxu0 0.0
      %1510 = vmatpush1.msra.mxu0 0.0
      %1511 = vmatprep.mubr.f32.mxu0 0.0
      %1512 = vmatmul.mubr.f32.gmra.mrb[0].mxu0 %v1445
      %v1513 = vpop.f32.mrb[0].mxu0
      %v1514 = vadd.f32 0.0, %v1513
      %v1515 = vpop.f32.mrb[0].mxu0
      %v1516 = vadd.f32 0.0, %v1515
      %1517 = vdwg.mxu0
      %1518 = vmatprep.subr.mxu0 0.0
      %1519 = vmatpush1.msra.mxu0 %v1441
      %1520 = vmatprep.subr.mxu0 0.0
      %1521 = vmatpush1.msra.mxu0 0.0
      %1522 = vmatprep.subr.mxu0 0.0
      %1523 = vmatpush1.msra.mxu0 0.0
      %1524 = vmatprep.subr.mxu0 0.0
      %1525 = vmatpush1.msra.mxu0 0.0
      %1526 = vmatprep.subr.mxu0 0.0
      %1527 = vmatpush1.msra.mxu0 0.0
      %1528 = vmatprep.subr.mxu0 0.0
      %1529 = vmatpush1.msra.mxu0 0.0
      %1530 = vmatprep.subr.mxu0 0.0
      %1531 = vmatpush1.msra.mxu0 0.0
      %1532 = vmatprep.subr.mxu0 0.0
      %1533 = vmatpush1.msra.mxu0 0.0
      %1534 = vmatprep.subr.mxu0 0.0
      %1535 = vmatpush1.msra.mxu0 0.0
      %1536 = vmatprep.subr.mxu0 0.0
      %1537 = vmatpush1.msra.mxu0 0.0
      %1538 = vmatprep.subr.mxu0 0.0
      %1539 = vmatpush1.msra.mxu0 0.0
      %1540 = vmatprep.subr.mxu0 0.0
      %1541 = vmatpush1.msra.mxu0 0.0
      %1542 = vmatprep.subr.mxu0 0.0
      %1543 = vmatpush1.msra.mxu0 0.0
      %1544 = vmatprep.subr.mxu0 0.0
      %1545 = vmatpush1.msra.mxu0 0.0
      %1546 = vmatprep.subr.mxu0 0.0
      %1547 = vmatpush1.msra.mxu0 0.0
      %1548 = vmatprep.subr.mxu0 0.0
      %1549 = vmatpush1.msra.mxu0 0.0
      %1550 = vmatprep.subr.mxu0 0.0
      %1551 = vmatpush1.msra.mxu0 0.0
      %1552 = vmatprep.subr.mxu0 0.0
      %1553 = vmatpush1.msra.mxu0 0.0
      %1554 = vmatprep.subr.mxu0 0.0
      %1555 = vmatpush1.msra.mxu0 0.0
      %1556 = vmatprep.subr.mxu0 0.0
      %1557 = vmatpush1.msra.mxu0 0.0
      %1558 = vmatprep.subr.mxu0 0.0
      %1559 = vmatpush1.msra.mxu0 0.0
      %1560 = vmatprep.subr.mxu0 0.0
      %1561 = vmatpush1.msra.mxu0 0.0
      %1562 = vmatprep.subr.mxu0 0.0
      %1563 = vmatpush1.msra.mxu0 0.0
      %1564 = vmatprep.subr.mxu0 0.0
      %1565 = vmatpush1.msra.mxu0 0.0
      %1566 = vmatprep.subr.mxu0 0.0
      %1567 = vmatpush1.msra.mxu0 0.0
      %1568 = vmatprep.subr.mxu0 0.0
      %1569 = vmatpush1.msra.mxu0 0.0
      %1570 = vmatprep.subr.mxu0 0.0
      %1571 = vmatpush1.msra.mxu0 0.0
      %1572 = vmatprep.subr.mxu0 0.0
      %1573 = vmatpush1.msra.mxu0 0.0
      %1574 = vmatprep.subr.mxu0 0.0
      %1575 = vmatpush1.msra.mxu0 0.0
      %1576 = vmatprep.subr.mxu0 0.0
      %1577 = vmatpush1.msra.mxu0 0.0
      %1578 = vmatprep.subr.mxu0 0.0
      %1579 = vmatpush1.msra.mxu0 0.0
      %1580 = vmatprep.subr.mxu0 0.0
      %1581 = vmatpush1.msra.mxu0 0.0
      %1582 = vmatprep.mubr.f32.mxu0 0.0
      %1583 = vmatmul.mubr.f32.gmra.mrb[0].mxu0 %v1445
      %v1584 = vpop.f32.mrb[0].mxu0
      %v1585 = vadd.f32 0.0, %v1584
      %v1586 = vpop.f32.mrb[0].mxu0
      %1587 = vdwg.mxu0
      %v1588 = vadd.f32 %v1429, %v1514
      %v1589 = vadd.f32 %v1430, %v1516
      %v1590 = vadd.f32 %v1431, %v1585
      %v1591 = vld [vmem:[%s2] sm:$0xff]
      %1593 = vset.pattern.permute.xlu0 0
      %1594 = vperm.xlu0 %1593, %v1591
      %v1595 = vpop.permute.xlu0 %1594
      %v1597 = vadd.f32 %v1588, %v1595
      %v1598 = vadd.f32 %v1589, %v1595
      %v1599 = vadd.f32 %v1590, %v1595
      %1600 = vst [vmem:[%s170] sm:$0xff] %v1597
      %1601 = vst [vmem:[%s170 + $0x8] sm:$0xff] %v1598
      %1602 = vst [vmem:[%s170 + $0x10] sm:$0xff] %v1599
      %p1603 = scmp.lt.s32.totalorder %s14, 1
      %s1604 = scalar_select %p1603, %s14, 1
      %s1605 = smul.addr %s1604, 3
      %s1606 = smul.addr %s1605, 8
      %s1607 = scalar_lea.vmem %s3, %s1606
      // Predicated region
      $region33: #{fft_conv1d_forward.1} parent=31 // pred_check
        %p1608 = pneg %p100
      $region34: #{fft_conv1d_forward.1} parent=31 // pred_check_branch
        %1610 = sbr.rel (%p1608) target = $region36
      $region35: #{fft_conv1d_forward.1} parent=31 // pred_region
        _
      $region36: #{fft_conv1d_forward.1} parent=31 // pred_fallthru
        _
    $region32: #{fft_conv1d_forward.1} parent=5 // pred_fallthru
      _
    %p1611 = scmp.le.s32.totalorder 2, %s9
    // Predicated region
    $region37: #{fft_conv1d_forward.1} parent=5 // pred_check
      %p1612 = pneg %p1611
    $region38: #{fft_conv1d_forward.1} parent=5 // pred_check_branch
      %1614 = sbr.rel (%p1612) target = $region40
    $region39: #{fft_conv1d_forward.1} parent=5 // pred_region
      %s1615 = ssub.s32 %s9, 2
      // Predicated region
      $region41: #{fft_conv1d_forward.1} parent=39 // pred_check
        %p1616 = pneg %p106
      $region42: #{fft_conv1d_forward.1} parent=39 // pred_check_branch
        %1618 = sbr.rel (%p1616) target = $region44
      $region43: #{fft_conv1d_forward.1} parent=39 // pred_region
        %p1619 = scmp.lt.s32.totalorder %s15, 1
        %s1620 = scalar_select %p1619, %s15, 1
        %s1621 = smul.addr %s1620, 3
        %s1622 = smul.addr %s1621, 8
        %s1623 = scalar_lea.vmem %s3, %s1622
      $region44: #{fft_conv1d_forward.1} parent=39 // pred_fallthru
        _
    $region40: #{fft_conv1d_forward.1} parent=5 // pred_fallthru
      _
  $region6: #{fft_conv1d_forward.1} parent=0 // loop_footer
    %s13 = sadd.s32 1, %s9
  $region7: #{fft_conv1d_forward.1} parent=0 // loop_footer_branch
    %8 = sbr.rel target = $region3
  $region8: #{fft_conv1d_forward.1} parent=0 // loop_exit
    _

</llo_original>
